<compile_context>
chip_gen: v7x
topology: tpu7x:2x2x1
jax: 0.10.0
libtpu: 0.0.40
codegen_flags: <defaults>
</compile_context>

<pallas_src>
import jax
import jax.numpy as jnp
from jax.experimental import pallas as pl
from jax.experimental.pallas import tpu as pltpu

EPS = 1e-5   # PyTorch BatchNorm2d default eps
CH = 128     # hidden width hard-coded in R_ASPP_module


# ---------------------------------------------------------------------------
# small structural operators (built once, outside the kernel)
# ---------------------------------------------------------------------------
def _avgpool_matrix_1d(in_size, k, s):
    """(out, in) matrix so that M @ v is a 1-D average pool (VALID padding)."""
    out_size = (in_size - k) // s + 1
    idx_out = jnp.arange(out_size)[:, None]
    idx_in = jnp.arange(in_size)[None, :]
    start = idx_out * s
    mask = (idx_in >= start) & (idx_in < start + k)
    return mask.astype(jnp.float32) / float(k)


def _bilinear_matrix_1d(out_size, in_size):
    """(out, in) matrix reproducing F.interpolate(mode='bilinear',
    align_corners=False) along one axis (half-pixel centers + edge clamp)."""
    scale = in_size / out_size
    i = jnp.arange(out_size, dtype=jnp.float32)
    src = jnp.maximum((i + 0.5) * scale - 0.5, 0.0)
    i0 = jnp.minimum(jnp.floor(src).astype(jnp.int32), in_size - 1)
    i1 = jnp.minimum(i0 + 1, in_size - 1)
    frac = src - i0.astype(jnp.float32)
    rows = jnp.arange(out_size)
    m = jnp.zeros((out_size, in_size), jnp.float32)
    m = m.at[rows, i0].add(1.0 - frac)
    m = m.at[rows, i1].add(frac)
    return m


# ---------------------------------------------------------------------------
# fused Pallas kernel: one (batch, output-spatial-tile) step per grid point
# ---------------------------------------------------------------------------
def _raspp_kernel(x_ref, f_ref, w1_ref, b1_ref, pool_ref, w2_ref, b2_ref,
                  gup_ref, fup_ref, wc1_ref, bc1_ref, wc2_ref, bc2_ref, o_ref):
    nc = wc1_ref.shape[0]
    x = x_ref[0]                                                    # (Cx, S)

    # layer1: 1x1 conv with BN folded into the weights, then ReLU.
    t1 = jnp.dot(w1_ref[...], x, preferred_element_type=jnp.float32) + b1_ref[...]
    t1 = jnp.maximum(t1, 0.0)                                       # (128, S)

    # F.avg_pool2d(kernel=9, stride=5) expressed as a matmul operator.
    pooled = jnp.dot(x, pool_ref[...], preferred_element_type=jnp.float32)   # (Cx, Sp)

    # layer2: 1x1 conv + sigmoid on the pooled grid.
    g = jnp.dot(w2_ref[...], pooled, preferred_element_type=jnp.float32) + b2_ref[...]
    g = 1.0 / (1.0 + jnp.exp(-g))                                   # (128, Sp)

    # bilinear upsample of the gate to (H, W), then modulate layer1 output.
    g_up = jnp.dot(g, gup_ref[...], preferred_element_type=jnp.float32)      # (128, S)
    z = g_up * t1                                                   # (128, S)

    # bilinear upsample to the current (Hf, Wf) spatial tile.
    z_up = jnp.dot(z, fup_ref[...], preferred_element_type=jnp.float32)      # (128, TSF)

    # out_conv1 on the upsampled tensor, out_conv2 on the raw feature tile,
    # concatenated along the channel (sublane) axis of the output block.
    o1 = jnp.dot(wc1_ref[...], z_up, preferred_element_type=jnp.float32) + bc1_ref[...]
    o2 = jnp.dot(wc2_ref[...], f_ref[0], preferred_element_type=jnp.float32) + bc2_ref[...]
    o_ref[0, :nc, :] = o1.astype(o_ref.dtype)
    o_ref[0, nc:, :] = o2.astype(o_ref.dtype)


# ---------------------------------------------------------------------------
# wrapper: BN folding, operator precompute, pallas_call plumbing (NCHW I/O)
# ---------------------------------------------------------------------------
def r_aspp_forward(x_nchw, feature_nchw, p):
    n, cx, h, w = x_nchw.shape
    nf, cf, hf, wf = feature_nchw.shape
    assert nf == n
    nc = p["wc1"].shape[0]
    ch = p["w1"].shape[0]
    s = h * w
    sf = hf * wf

    # ---- fold eval-mode BN into the layer1 conv (free wrapper precompute) ---
    scale = p["bn_gamma"] / jnp.sqrt(p["bn_var"] + EPS)
    w1f = (p["w1"] * scale[:, None]).astype(jnp.float32)
    b1f = (scale * (p["b1"] - p["bn_mean"]) + p["bn_beta"]).reshape(ch, 1).astype(jnp.float32)
    b2 = p["b2"].reshape(ch, 1).astype(jnp.float32)
    bc1 = p["bc1"].reshape(nc, 1).astype(jnp.float32)
    bc2 = p["bc2"].reshape(nc, 1).astype(jnp.float32)

    # ---- precomputed structural operators (pool + both bilinear resizes) ----
    hp = (h - 9) // 5 + 1
    wp = (w - 9) // 5 + 1
    pool_t = jnp.kron(_avgpool_matrix_1d(h, 9, 5),
                      _avgpool_matrix_1d(w, 9, 5)).T                 # (S, Sp)
    sp = pool_t.shape[1]
    gate_up_t = jnp.kron(_bilinear_matrix_1d(h, hp),
                         _bilinear_matrix_1d(w, wp)).T               # (Sp, S)
    final_up_t = jnp.kron(_bilinear_matrix_1d(hf, h),
                          _bilinear_matrix_1d(wf, w)).T              # (S, Sf)

    # ---- lane tile over the output spatial axis -----------------------------
    if sf % 256 == 0:
        tsf = 256
    elif sf % 128 == 0:
        tsf = 128
    else:
        tsf = sf
    n_tiles = sf // tsf

    # NCHW -> (N, C, H*W): pure reshapes, no transposes.
    x_flat = x_nchw.reshape(n, cx, s).astype(jnp.float32)
    f_flat = feature_nchw.reshape(n, cf, sf).astype(jnp.float32)

    const2d = lambda shape: pl.BlockSpec(shape, lambda i, j: (0, 0))

    out_flat = pl.pallas_call(
        _raspp_kernel,
        grid=(n, n_tiles),
        in_specs=[
            pl.BlockSpec((1, cx, s), lambda i, j: (i, 0, 0)),        # x (per batch)
            pl.BlockSpec((1, cf, tsf), lambda i, j: (i, 0, j)),      # feature tile
            const2d((ch, cx)),                                       # folded layer1 weight
            const2d((ch, 1)),                                        # folded layer1 bias
            const2d((s, sp)),                                        # avg-pool operator
            const2d((ch, cx)),                                       # layer2 weight
            const2d((ch, 1)),                                        # layer2 bias
            const2d((sp, s)),                                        # gate upsample operator
            pl.BlockSpec((s, tsf), lambda i, j: (0, j)),             # final upsample tile
            const2d((nc, ch)),                                       # out_conv1 weight
            const2d((nc, 1)),                                        # out_conv1 bias
            const2d((nc, cf)),                                       # out_conv2 weight
            const2d((nc, 1)),                                        # out_conv2 bias
        ],
        out_specs=pl.BlockSpec((1, 2 * nc, tsf), lambda i, j: (i, 0, j)),
        out_shape=jax.ShapeDtypeStruct((n, 2 * nc, sf), jnp.float32),
        compiler_params=pltpu.CompilerParams(
            dimension_semantics=("parallel", "parallel")),
    )(x_flat, f_flat, w1f, b1f, pool_t, p["w2"].astype(jnp.float32), b2,
      gate_up_t, final_up_t, p["wc1"].astype(jnp.float32), bc1,
      p["wc2"].astype(jnp.float32), bc2)

    return out_flat.reshape(n, 2 * nc, hf, wf)


# ---------------------------------------------------------------------------
# pure-JAX reference (follows the PyTorch op order) for a correctness check
# ---------------------------------------------------------------------------
def _reference_forward(x, feature, p):
    n, cx, h, w = x.shape
    _, cf, hf, wf = feature.shape
    P = jax.lax.Precision.HIGHEST
    # layer1: 1x1 conv (+bias) -> BN (eval) -> ReLU
    y = jnp.einsum("oc,nchw->nohw", p["w1"], x, precision=P) + p["b1"][:, None, None]
    sc = p["bn_gamma"] / jnp.sqrt(p["bn_var"] + EPS)
    y = (y - p["bn_mean"][:, None, None]) * sc[:, None, None] + p["bn_beta"][:, None, None]
    x_temp1 = jnp.maximum(y, 0.0)
    # F.avg_pool2d(kernel_size=9, stride=(5, 5))
    pooled = jax.lax.reduce_window(x, 0.0, jax.lax.add,
                                   (1, 1, 9, 9), (1, 1, 5, 5), "VALID") / 81.0
    # layer2: 1x1 conv (+bias) -> sigmoid
    g = jnp.einsum("oc,ncpq->nopq", p["w2"], pooled, precision=P) + p["b2"][:, None, None]
    g = jax.nn.sigmoid(g)
    # bilinear upsample of the gate to x_temp1's spatial size
    gh = _bilinear_matrix_1d(h, g.shape[2])
    gw = _bilinear_matrix_1d(w, g.shape[3])
    g_up = jnp.einsum("Hp,Wq,ncpq->ncHW", gh, gw, g, precision=P)
    out = g_up * x_temp1
    # bilinear upsample to feature's spatial size
    rh = _bilinear_matrix_1d(hf, h)
    rw = _bilinear_matrix_1d(wf, w)
    out_up = jnp.einsum("Hp,Wq,ncpq->ncHW", rh, rw, out, precision=P)
    out1 = jnp.einsum("oc,nchw->nohw", p["wc1"], out_up, precision=P) + p["bc1"][:, None, None]
    out2 = jnp.einsum("oc,nchw->nohw", p["wc2"], feature, precision=P) + p["bc2"][:, None, None]
    return jnp.concatenate([out1, out2], axis=1)


# ---------------------------------------------------------------------------
# deterministic parameter init (shapes from R_ASPP_module.__init__)
# ---------------------------------------------------------------------------
def init_params(key, cx, cf, num_classes, ch=CH):
    ks = jax.random.split(key, 12)
    f32 = jnp.float32
    kaiming = lambda k, shape, fan_in: jax.random.normal(k, shape, f32) * jnp.sqrt(2.0 / fan_in)
    return {
        "w1": kaiming(ks[0], (ch, cx), cx),                 # layer1 1x1 conv
        "b1": 0.1 * jax.random.normal(ks[1], (ch,), f32),
        "bn_gamma": 1.0 + 0.1 * jax.random.normal(ks[2], (ch,), f32),
        "bn_beta": 0.1 * jax.random.normal(ks[3], (ch,), f32),
        "bn_mean": 0.1 * jax.random.normal(ks[4], (ch,), f32),
        "bn_var": 1.0 + 0.1 * jnp.abs(jax.random.normal(ks[5], (ch,), f32)),
        "w2": kaiming(ks[6], (ch, cx), cx),                 # layer2 1x1 conv
        "b2": 0.1 * jax.random.normal(ks[7], (ch,), f32),
        "wc1": kaiming(ks[8], (num_classes, ch), ch),       # out_conv1
        "bc1": 0.1 * jax.random.normal(ks[9], (num_classes,), f32),
        "wc2": kaiming(ks[10], (num_classes, cf), cf),      # out_conv2
        "bc2": 0.1 * jax.random.normal(ks[11], (num_classes,), f32),
    }


if __name__ == "__main__":
    # R_ASPP_module(in_channels_x=4, in_channels_f=8, num_classes=4)
    CX, CF, NC = 4, 8, 4
    N, H, W = 2, 16, 16          # x spatial (>= 9 needed by the 9x9 avg-pool)
    HF, WF = 32, 32              # feature spatial (= output resolution)

    key = jax.random.PRNGKey(0)
    kx, kf, kp = jax.random.split(key, 3)
    x = jax.random.normal(kx, (N, CX, H, W), jnp.float32)
    feature = jax.random.normal(kf, (N, CF, HF, WF), jnp.float32)
    params = init_params(kp, CX, CF, NC)

    out = jax.block_until_ready(r_aspp_forward(x, feature, params))
    ref = _reference_forward(x, feature, params)

    assert out.shape == (N, 2 * NC, HF, WF), out.shape
    max_err = float(jnp.max(jnp.abs(out - ref)))
    assert jnp.allclose(out, ref, atol=5e-4, rtol=5e-4), f"mismatch: max |err| = {max_err}"
    print("KERNEL_OK")
</pallas_src>

<mosaic_0001>
module attributes {stable_mosaic.version = 11 : i64} {
  func.func @_raspp_kernel(%arg0: i32, %arg1: i32, %arg2: memref<1x4x256xf32, #tpu.memory_space<vmem>>, %arg3: memref<1x8x256xf32, #tpu.memory_space<vmem>>, %arg4: memref<128x4xf32, #tpu.memory_space<vmem>>, %arg5: memref<128x1xf32, #tpu.memory_space<vmem>>, %arg6: memref<256x4xf32, #tpu.memory_space<vmem>>, %arg7: memref<128x4xf32, #tpu.memory_space<vmem>>, %arg8: memref<128x1xf32, #tpu.memory_space<vmem>>, %arg9: memref<4x256xf32, #tpu.memory_space<vmem>>, %arg10: memref<256x256xf32, #tpu.memory_space<vmem>>, %arg11: memref<4x128xf32, #tpu.memory_space<vmem>>, %arg12: memref<4x1xf32, #tpu.memory_space<vmem>>, %arg13: memref<4x8xf32, #tpu.memory_space<vmem>>, %arg14: memref<4x1xf32, #tpu.memory_space<vmem>>, %arg15: memref<1x8x256xf32, #tpu.memory_space<vmem>>) attributes {dimension_semantics = [#tpu.dimension_semantics<parallel>, #tpu.dimension_semantics<parallel>], iteration_bounds = array<i64: 2, 4>, scalar_prefetch = 0 : i64, scratch_operands = 0 : i64, tpu.core_type = #tpu.core_type<tc>, window_params = [{transform_indices = @transform_0, window_bounds = array<i64: 1, 4, 256>}, {transform_indices = @transform_1, window_bounds = array<i64: 1, 8, 256>}, {pipeline_mode = #tpu.pipeline_mode<synchronous>, transform_indices = @transform_2, window_bounds = array<i64: 128, 4>}, {pipeline_mode = #tpu.pipeline_mode<synchronous>, transform_indices = @transform_3, window_bounds = array<i64: 128, 1>}, {pipeline_mode = #tpu.pipeline_mode<synchronous>, transform_indices = @transform_4, window_bounds = array<i64: 256, 4>}, {pipeline_mode = #tpu.pipeline_mode<synchronous>, transform_indices = @transform_5, window_bounds = array<i64: 128, 4>}, {pipeline_mode = #tpu.pipeline_mode<synchronous>, transform_indices = @transform_6, window_bounds = array<i64: 128, 1>}, {pipeline_mode = #tpu.pipeline_mode<synchronous>, transform_indices = @transform_7, window_bounds = array<i64: 4, 256>}, {transform_indices = @transform_8, window_bounds = array<i64: 256, 256>}, {pipeline_mode = #tpu.pipeline_mode<synchronous>, transform_indices = @transform_9, window_bounds = array<i64: 4, 128>}, {pipeline_mode = #tpu.pipeline_mode<synchronous>, transform_indices = @transform_10, window_bounds = array<i64: 4, 1>}, {pipeline_mode = #tpu.pipeline_mode<synchronous>, transform_indices = @transform_11, window_bounds = array<i64: 4, 8>}, {pipeline_mode = #tpu.pipeline_mode<synchronous>, transform_indices = @transform_12, window_bounds = array<i64: 4, 1>}, {transform_indices = @transform_13, window_bounds = array<i64: 1, 8, 256>}]} {
    %c0 = arith.constant 0 : index
    %c0_0 = arith.constant 0 : index
    %c0_1 = arith.constant 0 : index
    %0 = vector.load %arg2[%c0, %c0_0, %c0_1] : memref<1x4x256xf32, #tpu.memory_space<vmem>>, vector<1x4x256xf32>
    %1 = vector.shape_cast %0 : vector<1x4x256xf32> to vector<4x256xf32>
    %c0_2 = arith.constant 0 : index
    %c0_3 = arith.constant 0 : index
    %2 = vector.load %arg4[%c0_2, %c0_3] : memref<128x4xf32, #tpu.memory_space<vmem>>, vector<128x4xf32>
    %cst = arith.constant dense<0.000000e+00> : vector<128x256xf32>
    %3 = tpu.matmul %2, %1, %cst {dimension_numbers = #tpu.dot_dimension_numbers<[1], [0], [0], [1], [0, 0, 1, 1], [], []>} : vector<128x4xf32>, vector<4x256xf32>, vector<128x256xf32> -> vector<128x256xf32>
    %c0_4 = arith.constant 0 : index
    %c0_5 = arith.constant 0 : index
    %4 = vector.load %arg5[%c0_4, %c0_5] : memref<128x1xf32, #tpu.memory_space<vmem>>, vector<128x1xf32>
    %5 = vector.broadcast %4 : vector<128x1xf32> to vector<128x256xf32>
    %6 = arith.addf %3, %5 : vector<128x256xf32>
    %cst_6 = arith.constant 0.000000e+00 : f32
    %7 = vector.broadcast %cst_6 : f32 to vector<128x256xf32>
    %8 = arith.maximumf %6, %7 : vector<128x256xf32>
    %c0_7 = arith.constant 0 : index
    %c0_8 = arith.constant 0 : index
    %9 = vector.load %arg6[%c0_7, %c0_8] : memref<256x4xf32, #tpu.memory_space<vmem>>, vector<256x4xf32>
    %cst_9 = arith.constant dense<0.000000e+00> : vector<4x4xf32>
    %10 = tpu.matmul %1, %9, %cst_9 {dimension_numbers = #tpu.dot_dimension_numbers<[1], [0], [0], [1], [0, 0, 1, 1], [], []>} : vector<4x256xf32>, vector<256x4xf32>, vector<4x4xf32> -> vector<4x4xf32>
    %c0_10 = arith.constant 0 : index
    %c0_11 = arith.constant 0 : index
    %11 = vector.load %arg7[%c0_10, %c0_11] : memref<128x4xf32, #tpu.memory_space<vmem>>, vector<128x4xf32>
    %cst_12 = arith.constant dense<0.000000e+00> : vector<128x4xf32>
    %12 = tpu.matmul %11, %10, %cst_12 {dimension_numbers = #tpu.dot_dimension_numbers<[1], [0], [0], [1], [0, 0, 1, 1], [], []>} : vector<128x4xf32>, vector<4x4xf32>, vector<128x4xf32> -> vector<128x4xf32>
    %c0_13 = arith.constant 0 : index
    %c0_14 = arith.constant 0 : index
    %13 = vector.load %arg8[%c0_13, %c0_14] : memref<128x1xf32, #tpu.memory_space<vmem>>, vector<128x1xf32>
    %14 = vector.broadcast %13 : vector<128x1xf32> to vector<128x4xf32>
    %15 = arith.addf %12, %14 : vector<128x4xf32>
    %cst_15 = arith.constant 0.000000e+00 : f32
    %16 = vector.broadcast %cst_15 : f32 to vector<128x4xf32>
    %17 = arith.subf %16, %15 : vector<128x4xf32>
    %18 = math.exp %17 : vector<128x4xf32>
    %cst_16 = arith.constant 1.000000e+00 : f32
    %19 = vector.broadcast %cst_16 : f32 to vector<128x4xf32>
    %20 = arith.addf %19, %18 : vector<128x4xf32>
    %cst_17 = arith.constant 1.000000e+00 : f32
    %21 = vector.broadcast %cst_17 : f32 to vector<128x4xf32>
    %22 = arith.divf %21, %20 : vector<128x4xf32>
    %c0_18 = arith.constant 0 : index
    %c0_19 = arith.constant 0 : index
    %23 = vector.load %arg9[%c0_18, %c0_19] : memref<4x256xf32, #tpu.memory_space<vmem>>, vector<4x256xf32>
    %cst_20 = arith.constant dense<0.000000e+00> : vector<128x256xf32>
    %24 = tpu.matmul %22, %23, %cst_20 {dimension_numbers = #tpu.dot_dimension_numbers<[1], [0], [0], [1], [0, 0, 1, 1], [], []>} : vector<128x4xf32>, vector<4x256xf32>, vector<128x256xf32> -> vector<128x256xf32>
    %25 = arith.mulf %24, %8 : vector<128x256xf32>
    %c0_21 = arith.constant 0 : index
    %c0_22 = arith.constant 0 : index
    %26 = vector.load %arg10[%c0_21, %c0_22] : memref<256x256xf32, #tpu.memory_space<vmem>>, vector<256x256xf32>
    %cst_23 = arith.constant dense<0.000000e+00> : vector<128x256xf32>
    %27 = tpu.matmul %25, %26, %cst_23 {dimension_numbers = #tpu.dot_dimension_numbers<[1], [0], [0], [1], [0, 0, 1, 1], [], []>} : vector<128x256xf32>, vector<256x256xf32>, vector<128x256xf32> -> vector<128x256xf32>
    %c0_24 = arith.constant 0 : index
    %c0_25 = arith.constant 0 : index
    %28 = vector.load %arg11[%c0_24, %c0_25] : memref<4x128xf32, #tpu.memory_space<vmem>>, vector<4x128xf32>
    %cst_26 = arith.constant dense<0.000000e+00> : vector<4x256xf32>
    %29 = tpu.matmul %28, %27, %cst_26 {dimension_numbers = #tpu.dot_dimension_numbers<[1], [0], [0], [1], [0, 0, 1, 1], [], []>} : vector<4x128xf32>, vector<128x256xf32>, vector<4x256xf32> -> vector<4x256xf32>
    %c0_27 = arith.constant 0 : index
    %c0_28 = arith.constant 0 : index
    %30 = vector.load %arg12[%c0_27, %c0_28] : memref<4x1xf32, #tpu.memory_space<vmem>>, vector<4x1xf32>
    %31 = vector.broadcast %30 : vector<4x1xf32> to vector<4x256xf32>
    %32 = arith.addf %29, %31 : vector<4x256xf32>
    %c0_29 = arith.constant 0 : index
    %c0_30 = arith.constant 0 : index
    %33 = vector.load %arg13[%c0_29, %c0_30] : memref<4x8xf32, #tpu.memory_space<vmem>>, vector<4x8xf32>
    %c0_31 = arith.constant 0 : index
    %c0_32 = arith.constant 0 : index
    %c0_33 = arith.constant 0 : index
    %34 = vector.load %arg3[%c0_31, %c0_32, %c0_33] : memref<1x8x256xf32, #tpu.memory_space<vmem>>, vector<1x8x256xf32>
    %35 = vector.shape_cast %34 : vector<1x8x256xf32> to vector<8x256xf32>
    %cst_34 = arith.constant dense<0.000000e+00> : vector<4x256xf32>
    %36 = tpu.matmul %33, %35, %cst_34 {dimension_numbers = #tpu.dot_dimension_numbers<[1], [0], [0], [1], [0, 0, 1, 1], [], []>} : vector<4x8xf32>, vector<8x256xf32>, vector<4x256xf32> -> vector<4x256xf32>
    %c0_35 = arith.constant 0 : index
    %c0_36 = arith.constant 0 : index
    %37 = vector.load %arg14[%c0_35, %c0_36] : memref<4x1xf32, #tpu.memory_space<vmem>>, vector<4x1xf32>
    %38 = vector.broadcast %37 : vector<4x1xf32> to vector<4x256xf32>
    %39 = arith.addf %36, %38 : vector<4x256xf32>
    %c0_37 = arith.constant 0 : index
    %c0_38 = arith.constant 0 : index
    %c0_39 = arith.constant 0 : index
    %40 = vector.load %arg15[%c0_37, %c0_38, %c0_39] : memref<1x8x256xf32, #tpu.memory_space<vmem>>, vector<1x4x256xf32>
    %41 = vector.shape_cast %40 : vector<1x4x256xf32> to vector<4x256xf32>
    %42 = vector.shape_cast %32 : vector<4x256xf32> to vector<1x4x256xf32>
    tpu.vector_store %arg15[%c0_37, %c0_38, %c0_39], %42 {strides = array<i32>} : memref<1x8x256xf32, #tpu.memory_space<vmem>>, vector<1x4x256xf32>,
    %c0_40 = arith.constant 0 : index
    %c4 = arith.constant 4 : index
    %c0_41 = arith.constant 0 : index
    %43 = vector.load %arg15[%c0_40, %c4, %c0_41] : memref<1x8x256xf32, #tpu.memory_space<vmem>>, vector<1x4x256xf32>
    %44 = vector.shape_cast %43 : vector<1x4x256xf32> to vector<4x256xf32>
    %45 = vector.shape_cast %39 : vector<4x256xf32> to vector<1x4x256xf32>
    tpu.vector_store %arg15[%c0_40, %c4, %c0_41], %45 {strides = array<i32>} : memref<1x8x256xf32, #tpu.memory_space<vmem>>, vector<1x4x256xf32>,
    return
  }
  func.func @transform_0(%arg0: i32, %arg1: i32) -> (i32, i32, i32) {
    %c0_i32 = arith.constant 0 : i32
    %c0_i32_0 = arith.constant 0 : i32
    %c0_i32_1 = arith.constant 0 : i32
    return %arg0, %c0_i32, %c0_i32_0 : i32, i32, i32
  }
  func.func @transform_1(%arg0: i32, %arg1: i32) -> (i32, i32, i32) {
    %c0_i32 = arith.constant 0 : i32
    %c0_i32_0 = arith.constant 0 : i32
    return %arg0, %c0_i32, %arg1 : i32, i32, i32
  }
  func.func @transform_2(%arg0: i32, %arg1: i32) -> (i32, i32) {
    %c0_i32 = arith.constant 0 : i32
    %c0_i32_0 = arith.constant 0 : i32
    %c0_i32_1 = arith.constant 0 : i32
    return %c0_i32, %c0_i32_0 : i32, i32
  }
  func.func @transform_3(%arg0: i32, %arg1: i32) -> (i32, i32) {
    %c0_i32 = arith.constant 0 : i32
    %c0_i32_0 = arith.constant 0 : i32
    %c0_i32_1 = arith.constant 0 : i32
    return %c0_i32, %c0_i32_0 : i32, i32
  }
  func.func @transform_4(%arg0: i32, %arg1: i32) -> (i32, i32) {
    %c0_i32 = arith.constant 0 : i32
    %c0_i32_0 = arith.constant 0 : i32
    %c0_i32_1 = arith.constant 0 : i32
    return %c0_i32, %c0_i32_0 : i32, i32
  }
  func.func @transform_5(%arg0: i32, %arg1: i32) -> (i32, i32) {
    %c0_i32 = arith.constant 0 : i32
    %c0_i32_0 = arith.constant 0 : i32
    %c0_i32_1 = arith.constant 0 : i32
    return %c0_i32, %c0_i32_0 : i32, i32
  }
  func.func @transform_6(%arg0: i32, %arg1: i32) -> (i32, i32) {
    %c0_i32 = arith.constant 0 : i32
    %c0_i32_0 = arith.constant 0 : i32
    %c0_i32_1 = arith.constant 0 : i32
    return %c0_i32, %c0_i32_0 : i32, i32
  }
  func.func @transform_7(%arg0: i32, %arg1: i32) -> (i32, i32) {
    %c0_i32 = arith.constant 0 : i32
    %c0_i32_0 = arith.constant 0 : i32
    %c0_i32_1 = arith.constant 0 : i32
    return %c0_i32, %c0_i32_0 : i32, i32
  }
  func.func @transform_8(%arg0: i32, %arg1: i32) -> (i32, i32) {
    %c0_i32 = arith.constant 0 : i32
    %c0_i32_0 = arith.constant 0 : i32
    return %c0_i32, %arg1 : i32, i32
  }
  func.func @transform_9(%arg0: i32, %arg1: i32) -> (i32, i32) {
    %c0_i32 = arith.constant 0 : i32
    %c0_i32_0 = arith.constant 0 : i32
    %c0_i32_1 = arith.constant 0 : i32
    return %c0_i32, %c0_i32_0 : i32, i32
  }
  func.func @transform_10(%arg0: i32, %arg1: i32) -> (i32, i32) {
    %c0_i32 = arith.constant 0 : i32
    %c0_i32_0 = arith.constant 0 : i32
    %c0_i32_1 = arith.constant 0 : i32
    return %c0_i32, %c0_i32_0 : i32, i32
  }
  func.func @transform_11(%arg0: i32, %arg1: i32) -> (i32, i32) {
    %c0_i32 = arith.constant 0 : i32
    %c0_i32_0 = arith.constant 0 : i32
    %c0_i32_1 = arith.constant 0 : i32
    return %c0_i32, %c0_i32_0 : i32, i32
  }
  func.func @transform_12(%arg0: i32, %arg1: i32) -> (i32, i32) {
    %c0_i32 = arith.constant 0 : i32
    %c0_i32_0 = arith.constant 0 : i32
    %c0_i32_1 = arith.constant 0 : i32
    return %c0_i32, %c0_i32_0 : i32, i32
  }
  func.func @transform_13(%arg0: i32, %arg1: i32) -> (i32, i32, i32) {
    %c0_i32 = arith.constant 0 : i32
    %c0_i32_0 = arith.constant 0 : i32
    return %arg0, %c0_i32, %arg1 : i32, i32, i32
  }
}

</mosaic_0001>

<llo_original>
// kernel: tpu_custom_call.1
$region0: #{tpu_custom_call.1}
  #allocation0 [shape = 'u32[]', space=smem, size = 0x4, offset = 0x4, fixed_abs, tag = 'smem constant byte address 0x4 - core index']
  #allocation1 [shape = 'u32[144,128]{1,0:T(1,128)}', space=vmem, size = 0x12000, scoped, tag = 'internal scratch']
  %s0 = inlined_call_operand.vmem [shape: f32[2,4,256], index: 0, kind: input, shape index: {}]
  %s1 = inlined_call_operand.vmem [shape: f32[2,8,1024], index: 1, kind: input, shape index: {}]
  %s2 = inlined_call_operand.vmem [shape: f32[128,4], index: 2, kind: input, shape index: {}]
  %s3 = inlined_call_operand.vmem [shape: f32[128,1], index: 3, kind: input, shape index: {}]
  %s4 = inlined_call_operand.vmem [shape: f32[256,4], index: 4, kind: input, shape index: {}]
  %s5 = inlined_call_operand.vmem [shape: f32[128,4], index: 5, kind: input, shape index: {}]
  %s6 = inlined_call_operand.vmem [shape: f32[128,1], index: 6, kind: input, shape index: {}]
  %s7 = inlined_call_operand.vmem [shape: f32[4,256], index: 7, kind: input, shape index: {}]
  %s8 = inlined_call_operand.hbm [shape: f32[256,1024], index: 8, kind: input, shape index: {}]
  %s9 = inlined_call_operand.vmem [shape: f32[4,128], index: 9, kind: input, shape index: {}]
  %s10 = inlined_call_operand.vmem [shape: f32[4,1], index: 10, kind: input, shape index: {}]
  %s11 = inlined_call_operand.vmem [shape: f32[4,8], index: 11, kind: input, shape index: {}]
  %s12 = inlined_call_operand.vmem [shape: f32[4,1], index: 12, kind: input, shape index: {}]
  %s13 = inlined_call_operand.hbm [shape: f32[2,8,1024], index: 13, kind: output, shape index: {}]
  %s14 = sld [smem:[#allocation0]]
  $region89: #{tpu_custom_call.1} parent=0
    _
  %s16 = ssub.s32 1, %s14
  %s17 = scalar_select 0, %s16, %s14
  $region1: #{tpu_custom_call.1} parent=0
    #allocation2 [shape = 'u8[524288]{0}', space=vmem, size = 0x80000, scoped, tag = 'input window, operand 8']
    #allocation3 [shape = 's32[2]{0}', space=sflag, size = 0x8, scoped, tag = 'scoped memory for tpu_custom_call.1']
    #allocation4 [shape = 's32[2]{0}', space=sflag, size = 0x8, scoped, tag = 'scoped memory for tpu_custom_call.1']
    #allocation5 [shape = 'u8[16384]{0}', space=vmem, size = 0x4000, scoped, tag = 'output window, operand 0']
    %18 = vsyncpa [#allocation3], 0
    %s19 = scalar_lea.sflag [#allocation3], 1
    %20 = vsyncpa %s19, 0
    %21 = vsyncpa [#allocation4], 0
    %s22 = scalar_lea.sflag [#allocation4], 1
    %23 = vsyncpa %s22, 0
    loop: start=0, step=1, limit=10
    $region2: #{tpu_custom_call.1} parent=1 // loop_pre_header
      _
    $region3: #{tpu_custom_call.1} parent=1 // loop_header
      %s25 = sphi 0, %s29
      %p26 = scmp.ge.s32.totalorder %s25, 10
      %s32 = sphi 0, %s44
      %s33 = sphi 0, %s40
      %s34 = sphi 0, %s32
      %s35 = sphi 0, %s33
      %s36 = sphi 0, %s34
      %s37 = sphi 0, %s35
      %s47 = sphi 0, %s49
      %s50 = sphi 0, %s47
      %s51 = sphi 0, %s50
      %s67 = sphi 0, %s51
      %s75 = sphi 0, %s77
      %s78 = sphi 0, %s75
      %s79 = sphi 0, %s78
      %s95 = sphi 0, %s79
      %s99 = sphi 0, %s99
      %s101 = sphi 0, %s99
      %s102 = sphi 0, %s101
      %s116 = sphi 0, %s102
      %s120 = sphi 0, %s120
      %s122 = sphi 0, %s120
      %s123 = sphi 0, %s122
      %s137 = sphi 0, %s123
      %s141 = sphi 0, %s141
      %s143 = sphi 0, %s141
      %s144 = sphi 0, %s143
      %s158 = sphi 0, %s144
      %s162 = sphi 0, %s162
      %s164 = sphi 0, %s162
      %s165 = sphi 0, %s164
      %s179 = sphi 0, %s165
      %s183 = sphi 0, %s183
      %s185 = sphi 0, %s183
      %s186 = sphi 0, %s185
      %s200 = sphi 0, %s186
      %s204 = sphi 0, %s204
      %s206 = sphi 0, %s204
      %s207 = sphi 0, %s206
      %s221 = sphi 0, %s207
      %s227 = sphi 0, %s229
      %s230 = sphi 0, %s227
      %s231 = sphi 0, %s230
      %s247 = sphi 0, %s231
      %s251 = sphi 0, %s251
      %s253 = sphi 0, %s251
      %s254 = sphi 0, %s253
      %s268 = sphi 0, %s254
      %s272 = sphi 0, %s272
      %s274 = sphi 0, %s272
      %s275 = sphi 0, %s274
      %s289 = sphi 0, %s275
      %s293 = sphi 0, %s293
      %s295 = sphi 0, %s293
      %s296 = sphi 0, %s295
      %s310 = sphi 0, %s296
      %s314 = sphi 0, %s314
      %s316 = sphi 0, %s314
      %s317 = sphi 0, %s316
      %s331 = sphi 0, %s317
      %s339 = sphi 0, %s341
      %s342 = sphi 0, %s339
      %s343 = sphi 0, %s342
      %s359 = sphi 0, %s343
    $region4: #{tpu_custom_call.1} parent=1 // loop_header_branch
      %28 = sbr.rel (%p26) target = $region8
    $region5: #{tpu_custom_call.1} parent=1 // loop_body
      %s30 = ssub.s32 %s25, 1
      %s31 = ssub.s32 %s25, 2
      %s38 = sadd.s32 1, %s33
      %p39 = scmp.ge.s32.totalorder %s38, 4
      %s40 = scalar_select %p39, 0, %s38
      %s41 = sadd.s32 1, %s32
      %s42 = scalar_select %p39, %s41, %s32
      %p43 = scmp.ge.s32.totalorder %s42, 2
      %s44 = scalar_select %p43, 0, %s42
      %s45 = ssub.s32 %s32, %s44
      %p46 = scmp.eq.s32.totalorder %s45, 0
      %s48 = sadd.s32 %s47, 1
      %s49 = scalar_select %p46, %s47, %s48
      %p52 = pneg %p46
      %p53 = scmp.eq.s32.totalorder %s25, 7
      %p54 = por %p52, %p53
      %p55 = scmp.ne.s32.totalorder %s47, %s50
      %p56 = scmp.eq.s32.totalorder %s25, 0
      %p57 = por %p55, %p56
      %p58 = scmp.ne.s32.totalorder %s47, %s50
      %p59 = scmp.eq.s32.totalorder %s30, 7
      %p60 = por %p58, %p59
      %p61 = scmp.ne.s32.totalorder %s50, %s51
      %p62 = scmp.eq.s32.totalorder %s30, 0
      %p63 = por %p61, %p62
      %p64 = scmp.ne.s32.totalorder %s50, %s51
      %p65 = scmp.eq.s32.totalorder %s31, 7
      %p66 = por %p64, %p65
      %p68 = scmp.ne.s32.totalorder %s51, %s67
      %p69 = scmp.eq.s32.totalorder %s31, 0
      %p70 = por %p68, %p69
      %s71 = ssub.s32 %s32, %s44
      %s72 = ssub.s32 %s33, %s40
      %s73 = sor.u32 %s71, %s72
      %p74 = scmp.eq.s32.totalorder %s73, 0
      %s76 = sadd.s32 %s75, 1
      %s77 = scalar_select %p74, %s75, %s76
      %p80 = pneg %p74
      %p81 = scmp.eq.s32.totalorder %s25, 7
      %p82 = por %p80, %p81
      %p83 = scmp.ne.s32.totalorder %s75, %s78
      %p84 = scmp.eq.s32.totalorder %s25, 0
      %p85 = por %p83, %p84
      %p86 = scmp.ne.s32.totalorder %s75, %s78
      %p87 = scmp.eq.s32.totalorder %s30, 7
      %p88 = por %p86, %p87
      %p89 = scmp.ne.s32.totalorder %s78, %s79
      %p90 = scmp.eq.s32.totalorder %s30, 0
      %p91 = por %p89, %p90
      %p92 = scmp.ne.s32.totalorder %s78, %s79
      %p93 = scmp.eq.s32.totalorder %s31, 7
      %p94 = por %p92, %p93
      %p96 = scmp.ne.s32.totalorder %s79, %s95
      %p97 = scmp.eq.s32.totalorder %s31, 0
      %p98 = por %p96, %p97
      %s100 = sadd.s32 %s99, 1
      %p103 = scmp.eq.s32.totalorder %s25, 7
      %p104 = scmp.ne.s32.totalorder %s99, %s101
      %p105 = scmp.eq.s32.totalorder %s25, 0
      %p106 = por %p104, %p105
      %p107 = scmp.ne.s32.totalorder %s99, %s101
      %p108 = scmp.eq.s32.totalorder %s30, 7
      %p109 = por %p107, %p108
      %p110 = scmp.ne.s32.totalorder %s101, %s102
      %p111 = scmp.eq.s32.totalorder %s30, 0
      %p112 = por %p110, %p111
      %p113 = scmp.ne.s32.totalorder %s101, %s102
      %p114 = scmp.eq.s32.totalorder %s31, 7
      %p115 = por %p113, %p114
      %p117 = scmp.ne.s32.totalorder %s102, %s116
      %p118 = scmp.eq.s32.totalorder %s31, 0
      %p119 = por %p117, %p118
      %s121 = sadd.s32 %s120, 1
      %p124 = scmp.eq.s32.totalorder %s25, 7
      %p125 = scmp.ne.s32.totalorder %s120, %s122
      %p126 = scmp.eq.s32.totalorder %s25, 0
      %p127 = por %p125, %p126
      %p128 = scmp.ne.s32.totalorder %s120, %s122
      %p129 = scmp.eq.s32.totalorder %s30, 7
      %p130 = por %p128, %p129
      %p131 = scmp.ne.s32.totalorder %s122, %s123
      %p132 = scmp.eq.s32.totalorder %s30, 0
      %p133 = por %p131, %p132
      %p134 = scmp.ne.s32.totalorder %s122, %s123
      %p135 = scmp.eq.s32.totalorder %s31, 7
      %p136 = por %p134, %p135
      %p138 = scmp.ne.s32.totalorder %s123, %s137
      %p139 = scmp.eq.s32.totalorder %s31, 0
      %p140 = por %p138, %p139
      %s142 = sadd.s32 %s141, 1
      %p145 = scmp.eq.s32.totalorder %s25, 7
      %p146 = scmp.ne.s32.totalorder %s141, %s143
      %p147 = scmp.eq.s32.totalorder %s25, 0
      %p148 = por %p146, %p147
      %p149 = scmp.ne.s32.totalorder %s141, %s143
      %p150 = scmp.eq.s32.totalorder %s30, 7
      %p151 = por %p149, %p150
      %p152 = scmp.ne.s32.totalorder %s143, %s144
      %p153 = scmp.eq.s32.totalorder %s30, 0
      %p154 = por %p152, %p153
      %p155 = scmp.ne.s32.totalorder %s143, %s144
      %p156 = scmp.eq.s32.totalorder %s31, 7
      %p157 = por %p155, %p156
      %p159 = scmp.ne.s32.totalorder %s144, %s158
      %p160 = scmp.eq.s32.totalorder %s31, 0
      %p161 = por %p159, %p160
      %s163 = sadd.s32 %s162, 1
      %p166 = scmp.eq.s32.totalorder %s25, 7
      %p167 = scmp.ne.s32.totalorder %s162, %s164
      %p168 = scmp.eq.s32.totalorder %s25, 0
      %p169 = por %p167, %p168
      %p170 = scmp.ne.s32.totalorder %s162, %s164
      %p171 = scmp.eq.s32.totalorder %s30, 7
      %p172 = por %p170, %p171
      %p173 = scmp.ne.s32.totalorder %s164, %s165
      %p174 = scmp.eq.s32.totalorder %s30, 0
      %p175 = por %p173, %p174
      %p176 = scmp.ne.s32.totalorder %s164, %s165
      %p177 = scmp.eq.s32.totalorder %s31, 7
      %p178 = por %p176, %p177
      %p180 = scmp.ne.s32.totalorder %s165, %s179
      %p181 = scmp.eq.s32.totalorder %s31, 0
      %p182 = por %p180, %p181
      %s184 = sadd.s32 %s183, 1
      %p187 = scmp.eq.s32.totalorder %s25, 7
      %p188 = scmp.ne.s32.totalorder %s183, %s185
      %p189 = scmp.eq.s32.totalorder %s25, 0
      %p190 = por %p188, %p189
      %p191 = scmp.ne.s32.totalorder %s183, %s185
      %p192 = scmp.eq.s32.totalorder %s30, 7
      %p193 = por %p191, %p192
      %p194 = scmp.ne.s32.totalorder %s185, %s186
      %p195 = scmp.eq.s32.totalorder %s30, 0
      %p196 = por %p194, %p195
      %p197 = scmp.ne.s32.totalorder %s185, %s186
      %p198 = scmp.eq.s32.totalorder %s31, 7
      %p199 = por %p197, %p198
      %p201 = scmp.ne.s32.totalorder %s186, %s200
      %p202 = scmp.eq.s32.totalorder %s31, 0
      %p203 = por %p201, %p202
      %s205 = sadd.s32 %s204, 1
      %p208 = scmp.eq.s32.totalorder %s25, 7
      %p209 = scmp.ne.s32.totalorder %s204, %s206
      %p210 = scmp.eq.s32.totalorder %s25, 0
      %p211 = por %p209, %p210
      %p212 = scmp.ne.s32.totalorder %s204, %s206
      %p213 = scmp.eq.s32.totalorder %s30, 7
      %p214 = por %p212, %p213
      %p215 = scmp.ne.s32.totalorder %s206, %s207
      %p216 = scmp.eq.s32.totalorder %s30, 0
      %p217 = por %p215, %p216
      %p218 = scmp.ne.s32.totalorder %s206, %s207
      %p219 = scmp.eq.s32.totalorder %s31, 7
      %p220 = por %p218, %p219
      %p222 = scmp.ne.s32.totalorder %s207, %s221
      %p223 = scmp.eq.s32.totalorder %s31, 0
      %p224 = por %p222, %p223
      %s225 = ssub.s32 %s33, %s40
      %p226 = scmp.eq.s32.totalorder %s225, 0
      %s228 = sadd.s32 %s227, 1
      %s229 = scalar_select %p226, %s227, %s228
      %p232 = pneg %p226
      %p233 = scmp.eq.s32.totalorder %s25, 7
      %p234 = por %p232, %p233
      %p235 = scmp.ne.s32.totalorder %s227, %s230
      %p236 = scmp.eq.s32.totalorder %s25, 0
      %p237 = por %p235, %p236
      %p238 = scmp.ne.s32.totalorder %s227, %s230
      %p239 = scmp.eq.s32.totalorder %s30, 7
      %p240 = por %p238, %p239
      %p241 = scmp.ne.s32.totalorder %s230, %s231
      %p242 = scmp.eq.s32.totalorder %s30, 0
      %p243 = por %p241, %p242
      %p244 = scmp.ne.s32.totalorder %s230, %s231
      %p245 = scmp.eq.s32.totalorder %s31, 7
      %p246 = por %p244, %p245
      %p248 = scmp.ne.s32.totalorder %s231, %s247
      %p249 = scmp.eq.s32.totalorder %s31, 0
      %p250 = por %p248, %p249
      %s252 = sadd.s32 %s251, 1
      %p255 = scmp.eq.s32.totalorder %s25, 7
      %p256 = scmp.ne.s32.totalorder %s251, %s253
      %p257 = scmp.eq.s32.totalorder %s25, 0
      %p258 = por %p256, %p257
      %p259 = scmp.ne.s32.totalorder %s251, %s253
      %p260 = scmp.eq.s32.totalorder %s30, 7
      %p261 = por %p259, %p260
      %p262 = scmp.ne.s32.totalorder %s253, %s254
      %p263 = scmp.eq.s32.totalorder %s30, 0
      %p264 = por %p262, %p263
      %p265 = scmp.ne.s32.totalorder %s253, %s254
      %p266 = scmp.eq.s32.totalorder %s31, 7
      %p267 = por %p265, %p266
      %p269 = scmp.ne.s32.totalorder %s254, %s268
      %p270 = scmp.eq.s32.totalorder %s31, 0
      %p271 = por %p269, %p270
      %s273 = sadd.s32 %s272, 1
      %p276 = scmp.eq.s32.totalorder %s25, 7
      %p277 = scmp.ne.s32.totalorder %s272, %s274
      %p278 = scmp.eq.s32.totalorder %s25, 0
      %p279 = por %p277, %p278
      %p280 = scmp.ne.s32.totalorder %s272, %s274
      %p281 = scmp.eq.s32.totalorder %s30, 7
      %p282 = por %p280, %p281
      %p283 = scmp.ne.s32.totalorder %s274, %s275
      %p284 = scmp.eq.s32.totalorder %s30, 0
      %p285 = por %p283, %p284
      %p286 = scmp.ne.s32.totalorder %s274, %s275
      %p287 = scmp.eq.s32.totalorder %s31, 7
      %p288 = por %p286, %p287
      %p290 = scmp.ne.s32.totalorder %s275, %s289
      %p291 = scmp.eq.s32.totalorder %s31, 0
      %p292 = por %p290, %p291
      %s294 = sadd.s32 %s293, 1
      %p297 = scmp.eq.s32.totalorder %s25, 7
      %p298 = scmp.ne.s32.totalorder %s293, %s295
      %p299 = scmp.eq.s32.totalorder %s25, 0
      %p300 = por %p298, %p299
      %p301 = scmp.ne.s32.totalorder %s293, %s295
      %p302 = scmp.eq.s32.totalorder %s30, 7
      %p303 = por %p301, %p302
      %p304 = scmp.ne.s32.totalorder %s295, %s296
      %p305 = scmp.eq.s32.totalorder %s30, 0
      %p306 = por %p304, %p305
      %p307 = scmp.ne.s32.totalorder %s295, %s296
      %p308 = scmp.eq.s32.totalorder %s31, 7
      %p309 = por %p307, %p308
      %p311 = scmp.ne.s32.totalorder %s296, %s310
      %p312 = scmp.eq.s32.totalorder %s31, 0
      %p313 = por %p311, %p312
      %s315 = sadd.s32 %s314, 1
      %p318 = scmp.eq.s32.totalorder %s25, 7
      %p319 = scmp.ne.s32.totalorder %s314, %s316
      %p320 = scmp.eq.s32.totalorder %s25, 0
      %p321 = por %p319, %p320
      %p322 = scmp.ne.s32.totalorder %s314, %s316
      %p323 = scmp.eq.s32.totalorder %s30, 7
      %p324 = por %p322, %p323
      %p325 = scmp.ne.s32.totalorder %s316, %s317
      %p326 = scmp.eq.s32.totalorder %s30, 0
      %p327 = por %p325, %p326
      %p328 = scmp.ne.s32.totalorder %s316, %s317
      %p329 = scmp.eq.s32.totalorder %s31, 7
      %p330 = por %p328, %p329
      %p332 = scmp.ne.s32.totalorder %s317, %s331
      %p333 = scmp.eq.s32.totalorder %s31, 0
      %p334 = por %p332, %p333
      %s335 = ssub.s32 %s32, %s44
      %s336 = ssub.s32 %s33, %s40
      %s337 = sor.u32 %s335, %s336
      %p338 = scmp.eq.s32.totalorder %s337, 0
      %s340 = sadd.s32 %s339, 1
      %s341 = scalar_select %p338, %s339, %s340
      %p344 = pneg %p338
      %p345 = scmp.eq.s32.totalorder %s25, 7
      %p346 = por %p344, %p345
      %p347 = scmp.ne.s32.totalorder %s339, %s342
      %p348 = scmp.eq.s32.totalorder %s25, 0
      %p349 = por %p347, %p348
      %p350 = scmp.ne.s32.totalorder %s339, %s342
      %p351 = scmp.eq.s32.totalorder %s30, 7
      %p352 = por %p350, %p351
      %p353 = scmp.ne.s32.totalorder %s342, %s343
      %p354 = scmp.eq.s32.totalorder %s30, 0
      %p355 = por %p353, %p354
      %p356 = scmp.ne.s32.totalorder %s342, %s343
      %p357 = scmp.eq.s32.totalorder %s31, 7
      %p358 = por %p356, %p357
      %p360 = scmp.ne.s32.totalorder %s343, %s359
      %p361 = scmp.eq.s32.totalorder %s31, 0
      %p362 = por %p360, %p361
      %p363 = scmp.le.s32.totalorder 1, %s25
      %p364 = scmp.lt.s32.totalorder %s25, 9
      %p365 = pnand %p363, %p364
      %p366 = pneg %p365
      // Predicated region
      $region9: #{tpu_custom_call.1} parent=5 // pred_check
        _
      $region10: #{tpu_custom_call.1} parent=5 // pred_check_branch
        %368 = sbr.rel (%p365) target = $region12
      $region11: #{tpu_custom_call.1} parent=5 // pred_region
        %s369 = ssub.s32 %s25, 1
        // Predicated region
        $region13: #{tpu_custom_call.1} parent=11 // pred_check
          %p370 = pneg %p112
        $region14: #{tpu_custom_call.1} parent=11 // pred_check_branch
          %372 = sbr.rel (%p370) target = $region16
        $region15: #{tpu_custom_call.1} parent=11 // pred_region
          _
        $region16: #{tpu_custom_call.1} parent=11 // pred_fallthru
          _
        // Predicated region
        $region17: #{tpu_custom_call.1} parent=11 // pred_check
          %p373 = pneg %p133
        $region18: #{tpu_custom_call.1} parent=11 // pred_check_branch
          %375 = sbr.rel (%p373) target = $region20
        $region19: #{tpu_custom_call.1} parent=11 // pred_region
          _
        $region20: #{tpu_custom_call.1} parent=11 // pred_fallthru
          _
        // Predicated region
        $region21: #{tpu_custom_call.1} parent=11 // pred_check
          %p376 = pneg %p154
        $region22: #{tpu_custom_call.1} parent=11 // pred_check_branch
          %378 = sbr.rel (%p376) target = $region24
        $region23: #{tpu_custom_call.1} parent=11 // pred_region
          _
        $region24: #{tpu_custom_call.1} parent=11 // pred_fallthru
          _
        // Predicated region
        $region25: #{tpu_custom_call.1} parent=11 // pred_check
          %p379 = pneg %p175
        $region26: #{tpu_custom_call.1} parent=11 // pred_check_branch
          %381 = sbr.rel (%p379) target = $region28
        $region27: #{tpu_custom_call.1} parent=11 // pred_region
          _
        $region28: #{tpu_custom_call.1} parent=11 // pred_fallthru
          _
        // Predicated region
        $region29: #{tpu_custom_call.1} parent=11 // pred_check
          %p382 = pneg %p196
        $region30: #{tpu_custom_call.1} parent=11 // pred_check_branch
          %384 = sbr.rel (%p382) target = $region32
        $region31: #{tpu_custom_call.1} parent=11 // pred_region
          _
        $region32: #{tpu_custom_call.1} parent=11 // pred_fallthru
          _
        // Predicated region
        $region33: #{tpu_custom_call.1} parent=11 // pred_check
          %p385 = pneg %p217
        $region34: #{tpu_custom_call.1} parent=11 // pred_check_branch
          %387 = sbr.rel (%p385) target = $region36
        $region35: #{tpu_custom_call.1} parent=11 // pred_region
          _
        $region36: #{tpu_custom_call.1} parent=11 // pred_fallthru
          _
        // Predicated region
        $region37: #{tpu_custom_call.1} parent=11 // pred_check
          %p388 = pneg %p264
        $region38: #{tpu_custom_call.1} parent=11 // pred_check_branch
          %390 = sbr.rel (%p388) target = $region40
        $region39: #{tpu_custom_call.1} parent=11 // pred_region
          _
        $region40: #{tpu_custom_call.1} parent=11 // pred_fallthru
          _
        // Predicated region
        $region41: #{tpu_custom_call.1} parent=11 // pred_check
          %p391 = pneg %p285
        $region42: #{tpu_custom_call.1} parent=11 // pred_check_branch
          %393 = sbr.rel (%p391) target = $region44
        $region43: #{tpu_custom_call.1} parent=11 // pred_region
          _
        $region44: #{tpu_custom_call.1} parent=11 // pred_fallthru
          _
        // Predicated region
        $region45: #{tpu_custom_call.1} parent=11 // pred_check
          %p394 = pneg %p306
        $region46: #{tpu_custom_call.1} parent=11 // pred_check_branch
          %396 = sbr.rel (%p394) target = $region48
        $region47: #{tpu_custom_call.1} parent=11 // pred_region
          _
        $region48: #{tpu_custom_call.1} parent=11 // pred_fallthru
          _
        // Predicated region
        $region49: #{tpu_custom_call.1} parent=11 // pred_check
          %p397 = pneg %p327
        $region50: #{tpu_custom_call.1} parent=11 // pred_check_branch
          %399 = sbr.rel (%p397) target = $region52
        $region51: #{tpu_custom_call.1} parent=11 // pred_region
          _
        $region52: #{tpu_custom_call.1} parent=11 // pred_fallthru
          _
      $region12: #{tpu_custom_call.1} parent=5 // pred_fallthru
        _
      %p400 = scmp.lt.s32.totalorder %s25, 8
      // Predicated region
      $region53: #{tpu_custom_call.1} parent=5 // pred_check
        %p401 = pneg %p400
      $region54: #{tpu_custom_call.1} parent=5 // pred_check_branch
        %403 = sbr.rel (%p401) target = $region56
      $region55: #{tpu_custom_call.1} parent=5 // pred_region
        // Predicated region
        $region57: #{tpu_custom_call.1} parent=55 // pred_check
          %p404 = pneg %p57
        $region58: #{tpu_custom_call.1} parent=55 // pred_check_branch
          %406 = sbr.rel (%p404) target = $region60
        $region59: #{tpu_custom_call.1} parent=55 // pred_region
          %p407 = scmp.lt.s32.totalorder %s32, 1
          %s408 = scalar_select %p407, %s32, 1
          %s409 = smul.addr %s408, 2
          %s410 = smul.addr %s409, 4
          %s411 = scalar_lea.vmem %s0, %s410
        $region60: #{tpu_custom_call.1} parent=55 // pred_fallthru
          _
        // Predicated region
        $region61: #{tpu_custom_call.1} parent=55 // pred_check
          %p412 = pneg %p85
        $region62: #{tpu_custom_call.1} parent=55 // pred_check_branch
          %414 = sbr.rel (%p412) target = $region64
        $region63: #{tpu_custom_call.1} parent=55 // pred_region
          %s415 = smul.u32 2, %s33
          %p416 = scmp.lt.s32.totalorder %s32, 1
          %s417 = scalar_select %p416, %s32, 1
          %p418 = scmp.lt.s32.totalorder %s415, 7
          %s419 = scalar_select %p418, %s415, 7
          %s420 = smul.addr %s417, 8
          %s421 = sadd.s32 %s419, %s420
          %s422 = smul.addr %s421, 8
          %s423 = scalar_lea.vmem %s1, %s422
          %s424 = smul.u32 2, %s33
        $region64: #{tpu_custom_call.1} parent=55 // pred_fallthru
          _
        // Predicated region
        $region65: #{tpu_custom_call.1} parent=55 // pred_check
          %p425 = pneg %p237
        $region66: #{tpu_custom_call.1} parent=55 // pred_check_branch
          %427 = sbr.rel (%p425) target = $region68
        $region67: #{tpu_custom_call.1} parent=55 // pred_region
          %s428 = sand.u32 %s227, 1
          %s429 = scalar_lea.sflag [#allocation3], %s428
          %s430 = sand.u32 %s227, 1
          %s431 = smul.addr %s430, 512
          %s432 = scalar_lea.vmem [#allocation2], %s431
          %s433 = smul.u32 2, %s33
          %s435 = ssub.s32 8192, 8192
          %436 = vsyncadd %s429, %s435
          %s437 = smul.addr %s433, 128
          %s438 = scalar_lea.hbm %s8, %s437
          %s439 = sshll.u32 %s432, 4
          %s440 = int_to_ptr.vmem [resolvable:$true] %s439
          %445 = dma.hbm_to_vmem [thread:$0]  %s438, 8192, %s440, %s429, 1024, 256, 16
        $region68: #{tpu_custom_call.1} parent=55 // pred_fallthru
          _
      $region56: #{tpu_custom_call.1} parent=5 // pred_fallthru
        _
      %p446 = scmp.le.s32.totalorder 1, %s25
      %p447 = scmp.lt.s32.totalorder %s25, 9
      %p448 = pnand %p446, %p447
      %p449 = pneg %p448
      // Predicated region
      $region69: #{tpu_custom_call.1} parent=5 // pred_check
        _
      $region70: #{tpu_custom_call.1} parent=5 // pred_check_branch
        %451 = sbr.rel (%p448) target = $region72
      $region71: #{tpu_custom_call.1} parent=5 // pred_region
        %s452 = ssub.s32 %s25, 1
        %s453 = sand.u32 %s230, 1
        %s454 = scalar_lea.sflag [#allocation3], %s453
        %s455 = sand.u32 %s230, 1
        %s456 = smul.addr %s455, 512
        %s457 = scalar_lea.vmem [#allocation2], %s456
        // Predicated region
        $region73: #{tpu_custom_call.1} parent=71 // pred_check
          %p458 = pneg %p243
        $region74: #{tpu_custom_call.1} parent=71 // pred_check_branch
          %460 = sbr.rel (%p458) target = $region76
        $region75: #{tpu_custom_call.1} parent=71 // pred_region
          %461 = dma.done %s454, 8192
        $region76: #{tpu_custom_call.1} parent=71 // pred_fallthru
          _
        %p462 = scmp.lt.s32.totalorder %s34, 1
        %s463 = scalar_select %p462, %s34, 1
        %s464 = smul.addr %s463, 2
        %s465 = smul.addr %s464, 4
        %s466 = scalar_lea.vmem %s0, %s465
        %p467 = pneg %p63
        %p468 = pneg %p60
        %s469 = smul.u32 2, %s35
        %p470 = scmp.lt.s32.totalorder %s34, 1
        %s471 = scalar_select %p470, %s34, 1
        %p472 = scmp.lt.s32.totalorder %s469, 7
        %s473 = scalar_select %p472, %s469, 7
        %s474 = smul.addr %s471, 8
        %s475 = sadd.s32 %s473, %s474
        %s476 = smul.addr %s475, 8
        %s477 = scalar_lea.vmem %s1, %s476
        %p478 = pneg %p91
        %p479 = pneg %p88
        %p480 = pneg %p112
        %p481 = pneg %p109
        %p482 = pneg %p133
        %p483 = pneg %p130
        %p484 = pneg %p154
        %p485 = pneg %p151
        %p486 = pneg %p175
        %p487 = pneg %p172
        %p488 = pneg %p196
        %p489 = pneg %p193
        %p490 = pneg %p217
        %p491 = pneg %p214
        %s492 = sand.u32 %s230, 1
        %s493 = scalar_lea.sflag [#allocation3], %s492
        %s494 = sand.u32 %s230, 1
        %s495 = smul.addr %s494, 512
        %s496 = scalar_lea.vmem [#allocation2], %s495
        %p497 = pneg %p243
        %p498 = pneg %p240
        %p499 = pneg %p264
        %p500 = pneg %p261
        %p501 = pneg %p285
        %p502 = pneg %p282
        %p503 = pneg %p306
        %p504 = pneg %p303
        %p505 = pneg %p327
        %p506 = pneg %p324
        %p507 = pneg %p355
        %p508 = pneg %p352
        %s509 = sand.u32 %s342, 1
        %s510 = scalar_lea.sflag [#allocation4], %s509
        %s511 = sand.u32 %s342, 1
        %s512 = smul.addr %s511, 16
        %s513 = scalar_lea.vmem [#allocation5], %s512
        %p514 = scmp.lt.s32.totalorder %s34, 1
        %s515 = scalar_select %p514, %s34, 1
        %s516 = smul.addr %s515, 2
        %s517 = smul.addr %s516, 4
        %s518 = scalar_lea.vmem %s0, %s517
        %s519 = smul.u32 2, %s35
        %p520 = scmp.lt.s32.totalorder %s34, 1
        %s521 = scalar_select %p520, %s34, 1
        %p522 = scmp.lt.s32.totalorder %s519, 7
        %s523 = scalar_select %p522, %s519, 7
        %s524 = smul.addr %s521, 8
        %s525 = sadd.s32 %s523, %s524
        %s526 = smul.addr %s525, 8
        %s527 = scalar_lea.vmem %s1, %s526
        %s528 = smul.u32 2, %s35
        %s529 = smul.u32 2, %s35
        %s530 = smul.u32 2, %s35
        %v531 = vld [vmem:[%s518] sm:$0xff]
        %v532 = vld [vmem:[%s2] sm:$0xff]
        %v533 = vld [vmem:[%s2 + $0x8] sm:$0xff]
        %v534 = vld [vmem:[%s2 + $0x10] sm:$0xff]
        %v535 = vld [vmem:[%s2 + $0x18] sm:$0xff]
        %v536 = vld [vmem:[%s2 + $0x20] sm:$0xff]
        %v537 = vld [vmem:[%s2 + $0x28] sm:$0xff]
        %v538 = vld [vmem:[%s2 + $0x30] sm:$0xff]
        %v539 = vld [vmem:[%s2 + $0x38] sm:$0xff]
        %v540 = vld [vmem:[%s2 + $0x40] sm:$0xff]
        %v541 = vld [vmem:[%s2 + $0x48] sm:$0xff]
        %v542 = vld [vmem:[%s2 + $0x50] sm:$0xff]
        %v543 = vld [vmem:[%s2 + $0x58] sm:$0xff]
        %v544 = vld [vmem:[%s2 + $0x60] sm:$0xff]
        %v545 = vld [vmem:[%s2 + $0x68] sm:$0xff]
        %v546 = vld [vmem:[%s2 + $0x70] sm:$0xff]
        %v547 = vld [vmem:[%s2 + $0x78] sm:$0xff]
        %v548 = vld [vmem:[%s3] sm:$0xff]
        %v549 = vld [vmem:[%s3 + $0x8] sm:$0xff]
        %v550 = vld [vmem:[%s3 + $0x10] sm:$0xff]
        %v551 = vld [vmem:[%s3 + $0x18] sm:$0xff]
        %v552 = vld [vmem:[%s3 + $0x20] sm:$0xff]
        %v553 = vld [vmem:[%s3 + $0x28] sm:$0xff]
        %v554 = vld [vmem:[%s3 + $0x30] sm:$0xff]
        %v555 = vld [vmem:[%s3 + $0x38] sm:$0xff]
        %v556 = vld [vmem:[%s3 + $0x40] sm:$0xff]
        %v557 = vld [vmem:[%s3 + $0x48] sm:$0xff]
        %v558 = vld [vmem:[%s3 + $0x50] sm:$0xff]
        %v559 = vld [vmem:[%s3 + $0x58] sm:$0xff]
        %v560 = vld [vmem:[%s3 + $0x60] sm:$0xff]
        %v561 = vld [vmem:[%s3 + $0x68] sm:$0xff]
        %v562 = vld [vmem:[%s3 + $0x70] sm:$0xff]
        %v563 = vld [vmem:[%s3 + $0x78] sm:$0xff]
        %565 = vset.pattern.permute.xlu0 0
        %566 = vperm.xlu0 %565, %v548
        %v567 = vpop.permute.xlu0 %566
        %570 = vset.pattern.permute.xlu0 0
        %571 = vperm.xlu0 %570, %v549
        %v572 = vpop.permute.xlu0 %571
        %575 = vset.pattern.permute.xlu0 0
        %576 = vperm.xlu0 %575, %v550
        %v577 = vpop.permute.xlu0 %576
        %580 = vset.pattern.permute.xlu0 0
        %581 = vperm.xlu0 %580, %v551
        %v582 = vpop.permute.xlu0 %581
        %585 = vset.pattern.permute.xlu0 0
        %586 = vperm.xlu0 %585, %v552
        %v587 = vpop.permute.xlu0 %586
        %590 = vset.pattern.permute.xlu0 0
        %591 = vperm.xlu0 %590, %v553
        %v592 = vpop.permute.xlu0 %591
        %595 = vset.pattern.permute.xlu0 0
        %596 = vperm.xlu0 %595, %v554
        %v597 = vpop.permute.xlu0 %596
        %600 = vset.pattern.permute.xlu0 0
        %601 = vperm.xlu0 %600, %v555
        %v602 = vpop.permute.xlu0 %601
        %605 = vset.pattern.permute.xlu0 0
        %606 = vperm.xlu0 %605, %v556
        %v607 = vpop.permute.xlu0 %606
        %610 = vset.pattern.permute.xlu0 0
        %611 = vperm.xlu0 %610, %v557
        %v612 = vpop.permute.xlu0 %611
        %615 = vset.pattern.permute.xlu0 0
        %616 = vperm.xlu0 %615, %v558
        %v617 = vpop.permute.xlu0 %616
        %620 = vset.pattern.permute.xlu0 0
        %621 = vperm.xlu0 %620, %v559
        %v622 = vpop.permute.xlu0 %621
        %625 = vset.pattern.permute.xlu0 0
        %626 = vperm.xlu0 %625, %v560
        %v627 = vpop.permute.xlu0 %626
        %630 = vset.pattern.permute.xlu0 0
        %631 = vperm.xlu0 %630, %v561
        %v632 = vpop.permute.xlu0 %631
        %635 = vset.pattern.permute.xlu0 0
        %636 = vperm.xlu0 %635, %v562
        %v637 = vpop.permute.xlu0 %636
        %640 = vset.pattern.permute.xlu0 0
        %641 = vperm.xlu0 %640, %v563
        %v642 = vpop.permute.xlu0 %641
        %v645 = vcombine.high %v531, %v531
        %vm646 = vcmask 31744
        %v648 = vsel %vm646, %v532, 0
        %v651 = vsel %vm646, %v533, 0
        %v654 = vsel %vm646, %v534, 0
        %v657 = vsel %vm646, %v535, 0
        %v660 = vsel %vm646, %v536, 0
        %v663 = vsel %vm646, %v537, 0
        %v666 = vsel %vm646, %v538, 0
        %v669 = vsel %vm646, %v539, 0
        %v672 = vsel %vm646, %v540, 0
        %v675 = vsel %vm646, %v541, 0
        %v678 = vsel %vm646, %v542, 0
        %v681 = vsel %vm646, %v543, 0
        %v684 = vsel %vm646, %v544, 0
        %v687 = vsel %vm646, %v545, 0
        %v690 = vsel %vm646, %v546, 0
        %v693 = vsel %vm646, %v547, 0
        %vm695 = vcmask 1043456
        %v696 = vsel %vm695, %v531, 0
        %v698 = vsel %vm695, %v645, 0
        %700 = vmatprep.subr.mxu0 %v698
        %701 = vmatpush1.msra.mxu0 %v696
        %702 = vmatprep.subr.mxu0 0.0
        %703 = vmatpush1.msra.mxu0 0.0
        %704 = vmatprep.subr.mxu0 0.0
        %705 = vmatpush1.msra.mxu0 0.0
        %706 = vmatprep.subr.mxu0 0.0
        %707 = vmatpush1.msra.mxu0 0.0
        %708 = vmatprep.subr.mxu0 0.0
        %709 = vmatpush1.msra.mxu0 0.0
        %710 = vmatprep.subr.mxu0 0.0
        %711 = vmatpush1.msra.mxu0 0.0
        %712 = vmatprep.subr.mxu0 0.0
        %713 = vmatpush1.msra.mxu0 0.0
        %714 = vmatprep.subr.mxu0 0.0
        %715 = vmatpush1.msra.mxu0 0.0
        %716 = vmatprep.subr.mxu0 0.0
        %717 = vmatpush1.msra.mxu0 0.0
        %718 = vmatprep.subr.mxu0 0.0
        %719 = vmatpush1.msra.mxu0 0.0
        %720 = vmatprep.subr.mxu0 0.0
        %721 = vmatpush1.msra.mxu0 0.0
        %722 = vmatprep.subr.mxu0 0.0
        %723 = vmatpush1.msra.mxu0 0.0
        %724 = vmatprep.subr.mxu0 0.0
        %725 = vmatpush1.msra.mxu0 0.0
        %726 = vmatprep.subr.mxu0 0.0
        %727 = vmatpush1.msra.mxu0 0.0
        %728 = vmatprep.subr.mxu0 0.0
        %729 = vmatpush1.msra.mxu0 0.0
        %730 = vmatprep.subr.mxu0 0.0
        %731 = vmatpush1.msra.mxu0 0.0
        %732 = vmatprep.subr.mxu0 0.0
        %733 = vmatpush1.msra.mxu0 0.0
        %734 = vmatprep.subr.mxu0 0.0
        %735 = vmatpush1.msra.mxu0 0.0
        %736 = vmatprep.subr.mxu0 0.0
        %737 = vmatpush1.msra.mxu0 0.0
        %738 = vmatprep.subr.mxu0 0.0
        %739 = vmatpush1.msra.mxu0 0.0
        %740 = vmatprep.subr.mxu0 0.0
        %741 = vmatpush1.msra.mxu0 0.0
        %742 = vmatprep.subr.mxu0 0.0
        %743 = vmatpush1.msra.mxu0 0.0
        %744 = vmatprep.subr.mxu0 0.0
        %745 = vmatpush1.msra.mxu0 0.0
        %746 = vmatprep.subr.mxu0 0.0
        %747 = vmatpush1.msra.mxu0 0.0
        %748 = vmatprep.subr.mxu0 0.0
        %749 = vmatpush1.msra.mxu0 0.0
        %750 = vmatprep.subr.mxu0 0.0
        %751 = vmatpush1.msra.mxu0 0.0
        %752 = vmatprep.subr.mxu0 0.0
        %753 = vmatpush1.msra.mxu0 0.0
        %754 = vmatprep.subr.mxu0 0.0
        %755 = vmatpush1.msra.mxu0 0.0
        %756 = vmatprep.subr.mxu0 0.0
        %757 = vmatpush1.msra.mxu0 0.0
        %758 = vmatprep.subr.mxu0 0.0
        %759 = vmatpush1.msra.mxu0 0.0
        %760 = vmatprep.subr.mxu0 0.0
        %761 = vmatpush1.msra.mxu0 0.0
        %762 = vmatprep.subr.mxu0 0.0
        %763 = vmatpush1.msra.mxu0 0.0
        %764 = vmatprep.mubr.f32.mxu0 0.0
        %765 = vmatmul.mubr.f32.gmra.mrb[0].mxu0 %v648
        %v766 = vpop.f32.mrb[0].mxu0
        %v767 = vadd.f32 %v567, %v766
        %v768 = vpop.f32.mrb[0].mxu0
        %v769 = vadd.f32 %v567, %v768
        %770 = vmatprep.mubr.f32.mxu0 0.0
        %771 = vmatmul.mubr.f32.gmra.mrb[0].mxu0 %v651
        %v772 = vpop.f32.mrb[0].mxu0
        %v773 = vadd.f32 %v572, %v772
        %v774 = vpop.f32.mrb[0].mxu0
        %v775 = vadd.f32 %v572, %v774
        %776 = vmatprep.mubr.f32.mxu0 0.0
        %777 = vmatmul.mubr.f32.gmra.mrb[0].mxu0 %v654
        %v778 = vpop.f32.mrb[0].mxu0
        %v779 = vadd.f32 %v577, %v778
        %v780 = vpop.f32.mrb[0].mxu0
        %v781 = vadd.f32 %v577, %v780
        %782 = vmatprep.mubr.f32.mxu0 0.0
        %783 = vmatmul.mubr.f32.gmra.mrb[0].mxu0 %v657
        %v784 = vpop.f32.mrb[0].mxu0
        %v785 = vadd.f32 %v582, %v784
        %v786 = vpop.f32.mrb[0].mxu0
        %v787 = vadd.f32 %v582, %v786
        %788 = vmatprep.mubr.f32.mxu0 0.0
        %789 = vmatmul.mubr.f32.gmra.mrb[0].mxu0 %v660
        %v790 = vpop.f32.mrb[0].mxu0
        %v791 = vadd.f32 %v587, %v790
        %v792 = vpop.f32.mrb[0].mxu0
        %v793 = vadd.f32 %v587, %v792
        %794 = vmatprep.mubr.f32.mxu0 0.0
        %795 = vmatmul.mubr.f32.gmra.mrb[0].mxu0 %v663
        %v796 = vpop.f32.mrb[0].mxu0
        %v797 = vadd.f32 %v592, %v796
        %v798 = vpop.f32.mrb[0].mxu0
        %v799 = vadd.f32 %v592, %v798
        %800 = vmatprep.mubr.f32.mxu0 0.0
        %801 = vmatmul.mubr.f32.gmra.mrb[0].mxu0 %v666
        %v802 = vpop.f32.mrb[0].mxu0
        %v803 = vadd.f32 %v597, %v802
        %v804 = vpop.f32.mrb[0].mxu0
        %v805 = vadd.f32 %v597, %v804
        %806 = vmatprep.mubr.f32.mxu0 0.0
        %807 = vmatmul.mubr.f32.gmra.mrb[0].mxu0 %v669
        %v808 = vpop.f32.mrb[0].mxu0
        %v809 = vadd.f32 %v602, %v808
        %v810 = vpop.f32.mrb[0].mxu0
        %v811 = vadd.f32 %v602, %v810
        %812 = vmatprep.mubr.f32.mxu0 0.0
        %813 = vmatmul.mubr.f32.gmra.mrb[0].mxu0 %v672
        %v814 = vpop.f32.mrb[0].mxu0
        %v815 = vadd.f32 %v607, %v814
        %v816 = vpop.f32.mrb[0].mxu0
        %v817 = vadd.f32 %v607, %v816
        %818 = vmatprep.mubr.f32.mxu0 0.0
        %819 = vmatmul.mubr.f32.gmra.mrb[0].mxu0 %v675
        %v820 = vpop.f32.mrb[0].mxu0
        %v821 = vadd.f32 %v612, %v820
        %v822 = vpop.f32.mrb[0].mxu0
        %v823 = vadd.f32 %v612, %v822
        %824 = vmatprep.mubr.f32.mxu0 0.0
        %825 = vmatmul.mubr.f32.gmra.mrb[0].mxu0 %v678
        %v826 = vpop.f32.mrb[0].mxu0
        %v827 = vadd.f32 %v617, %v826
        %v828 = vpop.f32.mrb[0].mxu0
        %v829 = vadd.f32 %v617, %v828
        %830 = vmatprep.mubr.f32.mxu0 0.0
        %831 = vmatmul.mubr.f32.gmra.mrb[0].mxu0 %v681
        %v832 = vpop.f32.mrb[0].mxu0
        %v833 = vadd.f32 %v622, %v832
        %v834 = vpop.f32.mrb[0].mxu0
        %v835 = vadd.f32 %v622, %v834
        %836 = vmatprep.mubr.f32.mxu0 0.0
        %837 = vmatmul.mubr.f32.gmra.mrb[0].mxu0 %v684
        %v838 = vpop.f32.mrb[0].mxu0
        %v839 = vadd.f32 %v627, %v838
        %v840 = vpop.f32.mrb[0].mxu0
        %v841 = vadd.f32 %v627, %v840
        %842 = vmatprep.mubr.f32.mxu0 0.0
        %843 = vmatmul.mubr.f32.gmra.mrb[0].mxu0 %v687
        %v844 = vpop.f32.mrb[0].mxu0
        %v845 = vadd.f32 %v632, %v844
        %v846 = vpop.f32.mrb[0].mxu0
        %v847 = vadd.f32 %v632, %v846
        %848 = vmatprep.mubr.f32.mxu0 0.0
        %849 = vmatmul.mubr.f32.gmra.mrb[0].mxu0 %v690
        %v850 = vpop.f32.mrb[0].mxu0
        %v851 = vadd.f32 %v637, %v850
        %v852 = vpop.f32.mrb[0].mxu0
        %v853 = vadd.f32 %v637, %v852
        %854 = vmatprep.mubr.f32.mxu0 0.0
        %855 = vmatmul.mubr.f32.gmra.mrb[0].mxu0 %v693
        %v856 = vpop.f32.mrb[0].mxu0
        %v857 = vadd.f32 %v642, %v856
        %v858 = vpop.f32.mrb[0].mxu0
        %v859 = vadd.f32 %v642, %v858
        %860 = vdwg.mxu0
        %v861 = vmax.f32 %v767, 0.0
        %v862 = vmax.f32 %v769, 0.0
        %v863 = vmax.f32 %v773, 0.0
        %v864 = vmax.f32 %v775, 0.0
        %v865 = vmax.f32 %v779, 0.0
        %v866 = vmax.f32 %v781, 0.0
        %v867 = vmax.f32 %v785, 0.0
        %v868 = vmax.f32 %v787, 0.0
        %v869 = vmax.f32 %v791, 0.0
        %v870 = vmax.f32 %v793, 0.0
        %v871 = vmax.f32 %v797, 0.0
        %v872 = vmax.f32 %v799, 0.0
        %v873 = vmax.f32 %v803, 0.0
        %v874 = vmax.f32 %v805, 0.0
        %v875 = vmax.f32 %v809, 0.0
        %v876 = vmax.f32 %v811, 0.0
        %v877 = vmax.f32 %v815, 0.0
        %v878 = vmax.f32 %v817, 0.0
        %v879 = vmax.f32 %v821, 0.0
        %v880 = vmax.f32 %v823, 0.0
        %v881 = vmax.f32 %v827, 0.0
        %v882 = vmax.f32 %v829, 0.0
        %v883 = vmax.f32 %v833, 0.0
        %v884 = vmax.f32 %v835, 0.0
        %v885 = vmax.f32 %v839, 0.0
        %v886 = vmax.f32 %v841, 0.0
        %v887 = vmax.f32 %v845, 0.0
        %v888 = vmax.f32 %v847, 0.0
        %v889 = vmax.f32 %v851, 0.0
        %v890 = vmax.f32 %v853, 0.0
        %v891 = vmax.f32 %v857, 0.0
        %v892 = vmax.f32 %v859, 0.0
        %v893 = vld [vmem:[%s4] sm:$0xff]
        %v894 = vld [vmem:[%s4 + $0x8] sm:$0xff]
        %v895 = vld [vmem:[%s4 + $0x10] sm:$0xff]
        %v896 = vld [vmem:[%s4 + $0x18] sm:$0xff]
        %v897 = vld [vmem:[%s4 + $0x20] sm:$0xff]
        %v898 = vld [vmem:[%s4 + $0x28] sm:$0xff]
        %v899 = vld [vmem:[%s4 + $0x30] sm:$0xff]
        %v900 = vld [vmem:[%s4 + $0x38] sm:$0xff]
        %v901 = vld [vmem:[%s4 + $0x40] sm:$0xff]
        %v902 = vld [vmem:[%s4 + $0x48] sm:$0xff]
        %v903 = vld [vmem:[%s4 + $0x50] sm:$0xff]
        %v904 = vld [vmem:[%s4 + $0x58] sm:$0xff]
        %v905 = vld [vmem:[%s4 + $0x60] sm:$0xff]
        %v906 = vld [vmem:[%s4 + $0x68] sm:$0xff]
        %v907 = vld [vmem:[%s4 + $0x70] sm:$0xff]
        %v908 = vld [vmem:[%s4 + $0x78] sm:$0xff]
        %v909 = vld [vmem:[%s4 + $0x80] sm:$0xff]
        %v910 = vld [vmem:[%s4 + $0x88] sm:$0xff]
        %v911 = vld [vmem:[%s4 + $0x90] sm:$0xff]
        %v912 = vld [vmem:[%s4 + $0x98] sm:$0xff]
        %v913 = vld [vmem:[%s4 + $0xa0] sm:$0xff]
        %v914 = vld [vmem:[%s4 + $0xa8] sm:$0xff]
        %v915 = vld [vmem:[%s4 + $0xb0] sm:$0xff]
        %v916 = vld [vmem:[%s4 + $0xb8] sm:$0xff]
        %v917 = vld [vmem:[%s4 + $0xc0] sm:$0xff]
        %v918 = vld [vmem:[%s4 + $0xc8] sm:$0xff]
        %v919 = vld [vmem:[%s4 + $0xd0] sm:$0xff]
        %v920 = vld [vmem:[%s4 + $0xd8] sm:$0xff]
        %v921 = vld [vmem:[%s4 + $0xe0] sm:$0xff]
        %v922 = vld [vmem:[%s4 + $0xe8] sm:$0xff]
        %v923 = vld [vmem:[%s4 + $0xf0] sm:$0xff]
        %v924 = vld [vmem:[%s4 + $0xf8] sm:$0xff]
        %926 = vmatprep.subr.mxu0 0.0
        %927 = vmatpush1.msra.mxu0 %v893
        %928 = vmatprep.subr.mxu0 0.0
        %929 = vmatpush1.msra.mxu0 %v894
        %930 = vmatprep.subr.mxu0 0.0
        %931 = vmatpush1.msra.mxu0 %v895
        %932 = vmatprep.subr.mxu0 0.0
        %933 = vmatpush1.msra.mxu0 %v896
        %934 = vmatprep.subr.mxu0 0.0
        %935 = vmatpush1.msra.mxu0 %v897
        %936 = vmatprep.subr.mxu0 0.0
        %937 = vmatpush1.msra.mxu0 %v898
        %938 = vmatprep.subr.mxu0 0.0
        %939 = vmatpush1.msra.mxu0 %v899
        %940 = vmatprep.subr.mxu0 0.0
        %941 = vmatpush1.msra.mxu0 %v900
        %942 = vmatprep.subr.mxu0 0.0
        %943 = vmatpush1.msra.mxu0 %v901
        %944 = vmatprep.subr.mxu0 0.0
        %945 = vmatpush1.msra.mxu0 %v902
        %946 = vmatprep.subr.mxu0 0.0
        %947 = vmatpush1.msra.mxu0 %v903
        %948 = vmatprep.subr.mxu0 0.0
        %949 = vmatpush1.msra.mxu0 %v904
        %950 = vmatprep.subr.mxu0 0.0
        %951 = vmatpush1.msra.mxu0 %v905
        %952 = vmatprep.subr.mxu0 0.0
        %953 = vmatpush1.msra.mxu0 %v906
        %954 = vmatprep.subr.mxu0 0.0
        %955 = vmatpush1.msra.mxu0 %v907
        %956 = vmatprep.subr.mxu0 0.0
        %957 = vmatpush1.msra.mxu0 %v908
        %958 = vmatprep.subr.mxu0 0.0
        %959 = vmatpush1.msra.mxu0 %v909
        %960 = vmatprep.subr.mxu0 0.0
        %961 = vmatpush1.msra.mxu0 %v910
        %962 = vmatprep.subr.mxu0 0.0
        %963 = vmatpush1.msra.mxu0 %v911
        %964 = vmatprep.subr.mxu0 0.0
        %965 = vmatpush1.msra.mxu0 %v912
        %966 = vmatprep.subr.mxu0 0.0
        %967 = vmatpush1.msra.mxu0 %v913
        %968 = vmatprep.subr.mxu0 0.0
        %969 = vmatpush1.msra.mxu0 %v914
        %970 = vmatprep.subr.mxu0 0.0
        %971 = vmatpush1.msra.mxu0 %v915
        %972 = vmatprep.subr.mxu0 0.0
        %973 = vmatpush1.msra.mxu0 %v916
        %974 = vmatprep.subr.mxu0 0.0
        %975 = vmatpush1.msra.mxu0 %v917
        %976 = vmatprep.subr.mxu0 0.0
        %977 = vmatpush1.msra.mxu0 %v918
        %978 = vmatprep.subr.mxu0 0.0
        %979 = vmatpush1.msra.mxu0 %v919
        %980 = vmatprep.subr.mxu0 0.0
        %981 = vmatpush1.msra.mxu0 %v920
        %982 = vmatprep.subr.mxu0 0.0
        %983 = vmatpush1.msra.mxu0 %v921
        %984 = vmatprep.subr.mxu0 0.0
        %985 = vmatpush1.msra.mxu0 %v922
        %986 = vmatprep.subr.mxu0 0.0
        %987 = vmatpush1.msra.mxu0 %v923
        %988 = vmatprep.subr.mxu0 0.0
        %989 = vmatpush1.msra.mxu0 %v924
        %990 = vmatprep.mubr.f32.mxu0 %v645
        %991 = vmatmul.mubr.f32.gmra.mrb[0].mxu0 %v531
        %v992 = vpop.f32.mrb[0].mxu0
        %v993 = vadd.f32 0.0, %v992
        %v994 = vpop.f32.mrb[0].mxu0
        %995 = vdwg.mxu0
        %v996 = vld [vmem:[%s5] sm:$0xff]
        %v997 = vld [vmem:[%s5 + $0x8] sm:$0xff]
        %v998 = vld [vmem:[%s5 + $0x10] sm:$0xff]
        %v999 = vld [vmem:[%s5 + $0x18] sm:$0xff]
        %v1000 = vld [vmem:[%s5 + $0x20] sm:$0xff]
        %v1001 = vld [vmem:[%s5 + $0x28] sm:$0xff]
        %v1002 = vld [vmem:[%s5 + $0x30] sm:$0xff]
        %v1003 = vld [vmem:[%s5 + $0x38] sm:$0xff]
        %v1004 = vld [vmem:[%s5 + $0x40] sm:$0xff]
        %v1005 = vld [vmem:[%s5 + $0x48] sm:$0xff]
        %v1006 = vld [vmem:[%s5 + $0x50] sm:$0xff]
        %v1007 = vld [vmem:[%s5 + $0x58] sm:$0xff]
        %v1008 = vld [vmem:[%s5 + $0x60] sm:$0xff]
        %v1009 = vld [vmem:[%s5 + $0x68] sm:$0xff]
        %v1010 = vld [vmem:[%s5 + $0x70] sm:$0xff]
        %v1011 = vld [vmem:[%s5 + $0x78] sm:$0xff]
        %v1012 = vld [vmem:[%s6] sm:$0xff]
        %v1013 = vld [vmem:[%s6 + $0x8] sm:$0xff]
        %v1014 = vld [vmem:[%s6 + $0x10] sm:$0xff]
        %v1015 = vld [vmem:[%s6 + $0x18] sm:$0xff]
        %v1016 = vld [vmem:[%s6 + $0x20] sm:$0xff]
        %v1017 = vld [vmem:[%s6 + $0x28] sm:$0xff]
        %v1018 = vld [vmem:[%s6 + $0x30] sm:$0xff]
        %v1019 = vld [vmem:[%s6 + $0x38] sm:$0xff]
        %v1020 = vld [vmem:[%s6 + $0x40] sm:$0xff]
        %v1021 = vld [vmem:[%s6 + $0x48] sm:$0xff]
        %v1022 = vld [vmem:[%s6 + $0x50] sm:$0xff]
        %v1023 = vld [vmem:[%s6 + $0x58] sm:$0xff]
        %v1024 = vld [vmem:[%s6 + $0x60] sm:$0xff]
        %v1025 = vld [vmem:[%s6 + $0x68] sm:$0xff]
        %v1026 = vld [vmem:[%s6 + $0x70] sm:$0xff]
        %v1027 = vld [vmem:[%s6 + $0x78] sm:$0xff]
        %1029 = vset.pattern.permute.xlu0 0
        %1030 = vperm.xlu0 %1029, %v1012
        %v1031 = vpop.permute.xlu0 %1030
        %1034 = vset.pattern.permute.xlu0 0
        %1035 = vperm.xlu0 %1034, %v1013
        %v1036 = vpop.permute.xlu0 %1035
        %1039 = vset.pattern.permute.xlu0 0
        %1040 = vperm.xlu0 %1039, %v1014
        %v1041 = vpop.permute.xlu0 %1040
        %1044 = vset.pattern.permute.xlu0 0
        %1045 = vperm.xlu0 %1044, %v1015
        %v1046 = vpop.permute.xlu0 %1045
        %1049 = vset.pattern.permute.xlu0 0
        %1050 = vperm.xlu0 %1049, %v1016
        %v1051 = vpop.permute.xlu0 %1050
        %1054 = vset.pattern.permute.xlu0 0
        %1055 = vperm.xlu0 %1054, %v1017
        %v1056 = vpop.permute.xlu0 %1055
        %1059 = vset.pattern.permute.xlu0 0
        %1060 = vperm.xlu0 %1059, %v1018
        %v1061 = vpop.permute.xlu0 %1060
        %1064 = vset.pattern.permute.xlu0 0
        %1065 = vperm.xlu0 %1064, %v1019
        %v1066 = vpop.permute.xlu0 %1065
        %1069 = vset.pattern.permute.xlu0 0
        %1070 = vperm.xlu0 %1069, %v1020
        %v1071 = vpop.permute.xlu0 %1070
        %1074 = vset.pattern.permute.xlu0 0
        %1075 = vperm.xlu0 %1074, %v1021
        %v1076 = vpop.permute.xlu0 %1075
        %1079 = vset.pattern.permute.xlu0 0
        %1080 = vperm.xlu0 %1079, %v1022
        %v1081 = vpop.permute.xlu0 %1080
        %1084 = vset.pattern.permute.xlu0 0
        %1085 = vperm.xlu0 %1084, %v1023
        %v1086 = vpop.permute.xlu0 %1085
        %1089 = vset.pattern.permute.xlu0 0
        %1090 = vperm.xlu0 %1089, %v1024
        %v1091 = vpop.permute.xlu0 %1090
        %1094 = vset.pattern.permute.xlu0 0
        %1095 = vperm.xlu0 %1094, %v1025
        %v1096 = vpop.permute.xlu0 %1095
        %1099 = vset.pattern.permute.xlu0 0
        %1100 = vperm.xlu0 %1099, %v1026
        %v1101 = vpop.permute.xlu0 %1100
        %1104 = vset.pattern.permute.xlu0 0
        %1105 = vperm.xlu0 %1104, %v1027
        %v1106 = vpop.permute.xlu0 %1105
        %v1109 = vsel %vm646, %v996, 0
        %v1112 = vsel %vm646, %v997, 0
        %v1115 = vsel %vm646, %v998, 0
        %v1118 = vsel %vm646, %v999, 0
        %v1121 = vsel %vm646, %v1000, 0
        %v1124 = vsel %vm646, %v1001, 0
        %v1127 = vsel %vm646, %v1002, 0
        %v1130 = vsel %vm646, %v1003, 0
        %v1133 = vsel %vm646, %v1004, 0
        %v1136 = vsel %vm646, %v1005, 0
        %v1139 = vsel %vm646, %v1006, 0
        %v1142 = vsel %vm646, %v1007, 0
        %v1145 = vsel %vm646, %v1008, 0
        %v1148 = vsel %vm646, %v1009, 0
        %v1151 = vsel %vm646, %v1010, 0
        %v1154 = vsel %vm646, %v1011, 0
        %v1157 = vsel %vm695, %v993, 0
        %1159 = vmatprep.subr.mxu0 0.0
        %1160 = vmatpush1.msra.mxu0 %v1157
        %1161 = vmatprep.subr.mxu0 0.0
        %1162 = vmatpush1.msra.mxu0 0.0
        %1163 = vmatprep.subr.mxu0 0.0
        %1164 = vmatpush1.msra.mxu0 0.0
        %1165 = vmatprep.subr.mxu0 0.0
        %1166 = vmatpush1.msra.mxu0 0.0
        %1167 = vmatprep.subr.mxu0 0.0
        %1168 = vmatpush1.msra.mxu0 0.0
        %1169 = vmatprep.subr.mxu0 0.0
        %1170 = vmatpush1.msra.mxu0 0.0
        %1171 = vmatprep.subr.mxu0 0.0
        %1172 = vmatpush1.msra.mxu0 0.0
        %1173 = vmatprep.subr.mxu0 0.0
        %1174 = vmatpush1.msra.mxu0 0.0
        %1175 = vmatprep.subr.mxu0 0.0
        %1176 = vmatpush1.msra.mxu0 0.0
        %1177 = vmatprep.subr.mxu0 0.0
        %1178 = vmatpush1.msra.mxu0 0.0
        %1179 = vmatprep.subr.mxu0 0.0
        %1180 = vmatpush1.msra.mxu0 0.0
        %1181 = vmatprep.subr.mxu0 0.0
        %1182 = vmatpush1.msra.mxu0 0.0
        %1183 = vmatprep.subr.mxu0 0.0
        %1184 = vmatpush1.msra.mxu0 0.0
        %1185 = vmatprep.subr.mxu0 0.0
        %1186 = vmatpush1.msra.mxu0 0.0
        %1187 = vmatprep.subr.mxu0 0.0
        %1188 = vmatpush1.msra.mxu0 0.0
        %1189 = vmatprep.subr.mxu0 0.0
        %1190 = vmatpush1.msra.mxu0 0.0
        %1191 = vmatprep.subr.mxu0 0.0
        %1192 = vmatpush1.msra.mxu0 0.0
        %1193 = vmatprep.subr.mxu0 0.0
        %1194 = vmatpush1.msra.mxu0 0.0
        %1195 = vmatprep.subr.mxu0 0.0
        %1196 = vmatpush1.msra.mxu0 0.0
        %1197 = vmatprep.subr.mxu0 0.0
        %1198 = vmatpush1.msra.mxu0 0.0
        %1199 = vmatprep.subr.mxu0 0.0
        %1200 = vmatpush1.msra.mxu0 0.0
        %1201 = vmatprep.subr.mxu0 0.0
        %1202 = vmatpush1.msra.mxu0 0.0
        %1203 = vmatprep.subr.mxu0 0.0
        %1204 = vmatpush1.msra.mxu0 0.0
        %1205 = vmatprep.subr.mxu0 0.0
        %1206 = vmatpush1.msra.mxu0 0.0
        %1207 = vmatprep.subr.mxu0 0.0
        %1208 = vmatpush1.msra.mxu0 0.0
        %1209 = vmatprep.subr.mxu0 0.0
        %1210 = vmatpush1.msra.mxu0 0.0
        %1211 = vmatprep.subr.mxu0 0.0
        %1212 = vmatpush1.msra.mxu0 0.0
        %1213 = vmatprep.subr.mxu0 0.0
        %1214 = vmatpush1.msra.mxu0 0.0
        %1215 = vmatprep.subr.mxu0 0.0
        %1216 = vmatpush1.msra.mxu0 0.0
        %1217 = vmatprep.subr.mxu0 0.0
        %1218 = vmatpush1.msra.mxu0 0.0
        %1219 = vmatprep.subr.mxu0 0.0
        %1220 = vmatpush1.msra.mxu0 0.0
        %1221 = vmatprep.subr.mxu0 0.0
        %1222 = vmatpush1.msra.mxu0 0.0
        %1223 = vmatprep.mubr.f32.mxu0 0.0
        %1224 = vmatmul.mubr.f32.gmra.mrb[0].mxu0 %v1109
        %v1225 = vpop.f32.mrb[0].mxu0
        %v1226 = vadd.f32 %v1031, %v1225
        %v1227 = vpop.f32.mrb[0].mxu0
        %1228 = vmatprep.mubr.f32.mxu0 0.0
        %1229 = vmatmul.mubr.f32.gmra.mrb[0].mxu0 %v1112
        %v1230 = vpop.f32.mrb[0].mxu0
        %v1231 = vadd.f32 %v1036, %v1230
        %v1232 = vpop.f32.mrb[0].mxu0
        %1233 = vmatprep.mubr.f32.mxu0 0.0
        %1234 = vmatmul.mubr.f32.gmra.mrb[0].mxu0 %v1115
        %v1235 = vpop.f32.mrb[0].mxu0
        %v1236 = vadd.f32 %v1041, %v1235
        %v1237 = vpop.f32.mrb[0].mxu0
        %1238 = vmatprep.mubr.f32.mxu0 0.0
        %1239 = vmatmul.mubr.f32.gmra.mrb[0].mxu0 %v1118
        %v1240 = vpop.f32.mrb[0].mxu0
        %v1241 = vadd.f32 %v1046, %v1240
        %v1242 = vpop.f32.mrb[0].mxu0
        %1243 = vmatprep.mubr.f32.mxu0 0.0
        %1244 = vmatmul.mubr.f32.gmra.mrb[0].mxu0 %v1121
        %v1245 = vpop.f32.mrb[0].mxu0
        %v1246 = vadd.f32 %v1051, %v1245
        %v1247 = vpop.f32.mrb[0].mxu0
        %1248 = vmatprep.mubr.f32.mxu0 0.0
        %1249 = vmatmul.mubr.f32.gmra.mrb[0].mxu0 %v1124
        %v1250 = vpop.f32.mrb[0].mxu0
        %v1251 = vadd.f32 %v1056, %v1250
        %v1252 = vpop.f32.mrb[0].mxu0
        %1253 = vmatprep.mubr.f32.mxu0 0.0
        %1254 = vmatmul.mubr.f32.gmra.mrb[0].mxu0 %v1127
        %v1255 = vpop.f32.mrb[0].mxu0
        %v1256 = vadd.f32 %v1061, %v1255
        %v1257 = vpop.f32.mrb[0].mxu0
        %1258 = vmatprep.mubr.f32.mxu0 0.0
        %1259 = vmatmul.mubr.f32.gmra.mrb[0].mxu0 %v1130
        %v1260 = vpop.f32.mrb[0].mxu0
        %v1261 = vadd.f32 %v1066, %v1260
        %v1262 = vpop.f32.mrb[0].mxu0
        %1263 = vmatprep.mubr.f32.mxu0 0.0
        %1264 = vmatmul.mubr.f32.gmra.mrb[0].mxu0 %v1133
        %v1265 = vpop.f32.mrb[0].mxu0
        %v1266 = vadd.f32 %v1071, %v1265
        %v1267 = vpop.f32.mrb[0].mxu0
        %1268 = vmatprep.mubr.f32.mxu0 0.0
        %1269 = vmatmul.mubr.f32.gmra.mrb[0].mxu0 %v1136
        %v1270 = vpop.f32.mrb[0].mxu0
        %v1271 = vadd.f32 %v1076, %v1270
        %v1272 = vpop.f32.mrb[0].mxu0
        %1273 = vmatprep.mubr.f32.mxu0 0.0
        %1274 = vmatmul.mubr.f32.gmra.mrb[0].mxu0 %v1139
        %v1275 = vpop.f32.mrb[0].mxu0
        %v1276 = vadd.f32 %v1081, %v1275
        %v1277 = vpop.f32.mrb[0].mxu0
        %1278 = vmatprep.mubr.f32.mxu0 0.0
        %1279 = vmatmul.mubr.f32.gmra.mrb[0].mxu0 %v1142
        %v1280 = vpop.f32.mrb[0].mxu0
        %v1281 = vadd.f32 %v1086, %v1280
        %v1282 = vpop.f32.mrb[0].mxu0
        %1283 = vmatprep.mubr.f32.mxu0 0.0
        %1284 = vmatmul.mubr.f32.gmra.mrb[0].mxu0 %v1145
        %v1285 = vpop.f32.mrb[0].mxu0
        %v1286 = vadd.f32 %v1091, %v1285
        %v1287 = vpop.f32.mrb[0].mxu0
        %1288 = vmatprep.mubr.f32.mxu0 0.0
        %1289 = vmatmul.mubr.f32.gmra.mrb[0].mxu0 %v1148
        %v1290 = vpop.f32.mrb[0].mxu0
        %v1291 = vadd.f32 %v1096, %v1290
        %v1292 = vpop.f32.mrb[0].mxu0
        %1293 = vmatprep.mubr.f32.mxu0 0.0
        %1294 = vmatmul.mubr.f32.gmra.mrb[0].mxu0 %v1151
        %v1295 = vpop.f32.mrb[0].mxu0
        %v1296 = vadd.f32 %v1101, %v1295
        %v1297 = vpop.f32.mrb[0].mxu0
        %1298 = vmatprep.mubr.f32.mxu0 0.0
        %1299 = vmatmul.mubr.f32.gmra.mrb[0].mxu0 %v1154
        %v1300 = vpop.f32.mrb[0].mxu0
        %v1301 = vadd.f32 %v1106, %v1300
        %v1302 = vpop.f32.mrb[0].mxu0
        %1303 = vdwg.mxu0
        %v1304 = vsub.f32 0.0, %v1226
        %v1305 = vsub.f32 0.0, %v1231
        %v1306 = vsub.f32 0.0, %v1236
        %v1307 = vsub.f32 0.0, %v1241
        %v1308 = vsub.f32 0.0, %v1246
        %v1309 = vsub.f32 0.0, %v1251
        %v1310 = vsub.f32 0.0, %v1256
        %v1311 = vsub.f32 0.0, %v1261
        %v1312 = vsub.f32 0.0, %v1266
        %v1313 = vsub.f32 0.0, %v1271
        %v1314 = vsub.f32 0.0, %v1276
        %v1315 = vsub.f32 0.0, %v1281
        %v1316 = vsub.f32 0.0, %v1286
        %v1317 = vsub.f32 0.0, %v1291
        %v1318 = vsub.f32 0.0, %v1296
        %v1319 = vsub.f32 0.0, %v1301
        %v1320 = vmul.f32 %v1304, 1.442695
        %v1321 = vpow.pop %v1320
        %v1322 = vmul.f32 %v1305, 1.442695
        %v1323 = vpow.pop %v1322
        %v1324 = vmul.f32 %v1306, 1.442695
        %v1325 = vpow.pop %v1324
        %v1326 = vmul.f32 %v1307, 1.442695
        %v1327 = vpow.pop %v1326
        %v1328 = vmul.f32 %v1308, 1.442695
        %v1329 = vpow.pop %v1328
        %v1330 = vmul.f32 %v1309, 1.442695
        %v1331 = vpow.pop %v1330
        %v1332 = vmul.f32 %v1310, 1.442695
        %v1333 = vpow.pop %v1332
        %v1334 = vmul.f32 %v1311, 1.442695
        %v1335 = vpow.pop %v1334
        %v1336 = vmul.f32 %v1312, 1.442695
        %v1337 = vpow.pop %v1336
        %v1338 = vmul.f32 %v1313, 1.442695
        %v1339 = vpow.pop %v1338
        %v1340 = vmul.f32 %v1314, 1.442695
        %v1341 = vpow.pop %v1340
        %v1342 = vmul.f32 %v1315, 1.442695
        %v1343 = vpow.pop %v1342
        %v1344 = vmul.f32 %v1316, 1.442695
        %v1345 = vpow.pop %v1344
        %v1346 = vmul.f32 %v1317, 1.442695
        %v1347 = vpow.pop %v1346
        %v1348 = vmul.f32 %v1318, 1.442695
        %v1349 = vpow.pop %v1348
        %v1350 = vmul.f32 %v1319, 1.442695
        %v1351 = vpow.pop %v1350
        %v1352 = vadd.f32 %v1321, 1.0
        %v1353 = vadd.f32 %v1323, 1.0
        %v1354 = vadd.f32 %v1325, 1.0
        %v1355 = vadd.f32 %v1327, 1.0
        %v1356 = vadd.f32 %v1329, 1.0
        %v1357 = vadd.f32 %v1331, 1.0
        %v1358 = vadd.f32 %v1333, 1.0
        %v1359 = vadd.f32 %v1335, 1.0
        %v1360 = vadd.f32 %v1337, 1.0
        %v1361 = vadd.f32 %v1339, 1.0
        %v1362 = vadd.f32 %v1341, 1.0
        %v1363 = vadd.f32 %v1343, 1.0
        %v1364 = vadd.f32 %v1345, 1.0
        %v1365 = vadd.f32 %v1347, 1.0
        %v1366 = vadd.f32 %v1349, 1.0
        %v1367 = vadd.f32 %v1351, 1.0
        %v1368 = vrcp.pop %v1352
        %v1369 = vmul.f32 1.0, %v1368
        %v1370 = vrcp.pop %v1353
        %v1371 = vmul.f32 1.0, %v1370
        %v1372 = vrcp.pop %v1354
        %v1373 = vmul.f32 1.0, %v1372
        %v1374 = vrcp.pop %v1355
        %v1375 = vmul.f32 1.0, %v1374
        %v1376 = vrcp.pop %v1356
        %v1377 = vmul.f32 1.0, %v1376
        %v1378 = vrcp.pop %v1357
        %v1379 = vmul.f32 1.0, %v1378
        %v1380 = vrcp.pop %v1358
        %v1381 = vmul.f32 1.0, %v1380
        %v1382 = vrcp.pop %v1359
        %v1383 = vmul.f32 1.0, %v1382
        %v1384 = vrcp.pop %v1360
        %v1385 = vmul.f32 1.0, %v1384
        %v1386 = vrcp.pop %v1361
        %v1387 = vmul.f32 1.0, %v1386
        %v1388 = vrcp.pop %v1362
        %v1389 = vmul.f32 1.0, %v1388
        %v1390 = vrcp.pop %v1363
        %v1391 = vmul.f32 1.0, %v1390
        %v1392 = vrcp.pop %v1364
        %v1393 = vmul.f32 1.0, %v1392
        %v1394 = vrcp.pop %v1365
        %v1395 = vmul.f32 1.0, %v1394
        %v1396 = vrcp.pop %v1366
        %v1397 = vmul.f32 1.0, %v1396
        %v1398 = vrcp.pop %v1367
        %v1399 = vmul.f32 1.0, %v1398
        %v1400 = vld [vmem:[%s7] sm:$0xff]
        %v1402 = vcombine.high %v1400, %v1400
        %v1404 = vsel %vm646, %v1369, 0
        %v1407 = vsel %vm646, %v1371, 0
        %v1410 = vsel %vm646, %v1373, 0
        %v1413 = vsel %vm646, %v1375, 0
        %v1416 = vsel %vm646, %v1377, 0
        %v1419 = vsel %vm646, %v1379, 0
        %v1422 = vsel %vm646, %v1381, 0
        %v1425 = vsel %vm646, %v1383, 0
        %v1428 = vsel %vm646, %v1385, 0
        %v1431 = vsel %vm646, %v1387, 0
        %v1434 = vsel %vm646, %v1389, 0
        %v1437 = vsel %vm646, %v1391, 0
        %v1440 = vsel %vm646, %v1393, 0
        %v1443 = vsel %vm646, %v1395, 0
        %v1446 = vsel %vm646, %v1397, 0
        %v1449 = vsel %vm646, %v1399, 0
        %v1451 = vsel %vm695, %v1400, 0
        %v1453 = vsel %vm695, %v1402, 0
        %1455 = vmatprep.subr.mxu0 %v1453
        %1456 = vmatpush1.msra.mxu0 %v1451
        %1457 = vmatprep.subr.mxu0 0.0
        %1458 = vmatpush1.msra.mxu0 0.0
        %1459 = vmatprep.subr.mxu0 0.0
        %1460 = vmatpush1.msra.mxu0 0.0
        %1461 = vmatprep.subr.mxu0 0.0
        %1462 = vmatpush1.msra.mxu0 0.0
        %1463 = vmatprep.subr.mxu0 0.0
        %1464 = vmatpush1.msra.mxu0 0.0
        %1465 = vmatprep.subr.mxu0 0.0
        %1466 = vmatpush1.msra.mxu0 0.0
        %1467 = vmatprep.subr.mxu0 0.0
        %1468 = vmatpush1.msra.mxu0 0.0
        %1469 = vmatprep.subr.mxu0 0.0
        %1470 = vmatpush1.msra.mxu0 0.0
        %1471 = vmatprep.subr.mxu0 0.0
        %1472 = vmatpush1.msra.mxu0 0.0
        %1473 = vmatprep.subr.mxu0 0.0
        %1474 = vmatpush1.msra.mxu0 0.0
        %1475 = vmatprep.subr.mxu0 0.0
        %1476 = vmatpush1.msra.mxu0 0.0
        %1477 = vmatprep.subr.mxu0 0.0
        %1478 = vmatpush1.msra.mxu0 0.0
        %1479 = vmatprep.subr.mxu0 0.0
        %1480 = vmatpush1.msra.mxu0 0.0
        %1481 = vmatprep.subr.mxu0 0.0
        %1482 = vmatpush1.msra.mxu0 0.0
        %1483 = vmatprep.subr.mxu0 0.0
        %1484 = vmatpush1.msra.mxu0 0.0
        %1485 = vmatprep.subr.mxu0 0.0
        %1486 = vmatpush1.msra.mxu0 0.0
        %1487 = vmatprep.subr.mxu0 0.0
        %1488 = vmatpush1.msra.mxu0 0.0
        %1489 = vmatprep.subr.mxu0 0.0
        %1490 = vmatpush1.msra.mxu0 0.0
        %1491 = vmatprep.subr.mxu0 0.0
        %1492 = vmatpush1.msra.mxu0 0.0
        %1493 = vmatprep.subr.mxu0 0.0
        %1494 = vmatpush1.msra.mxu0 0.0
        %1495 = vmatprep.subr.mxu0 0.0
        %1496 = vmatpush1.msra.mxu0 0.0
        %1497 = vmatprep.subr.mxu0 0.0
        %1498 = vmatpush1.msra.mxu0 0.0
        %1499 = vmatprep.subr.mxu0 0.0
        %1500 = vmatpush1.msra.mxu0 0.0
        %1501 = vmatprep.subr.mxu0 0.0
        %1502 = vmatpush1.msra.mxu0 0.0
        %1503 = vmatprep.subr.mxu0 0.0
        %1504 = vmatpush1.msra.mxu0 0.0
        %1505 = vmatprep.subr.mxu0 0.0
        %1506 = vmatpush1.msra.mxu0 0.0
        %1507 = vmatprep.subr.mxu0 0.0
        %1508 = vmatpush1.msra.mxu0 0.0
        %1509 = vmatprep.subr.mxu0 0.0
        %1510 = vmatpush1.msra.mxu0 0.0
        %1511 = vmatprep.subr.mxu0 0.0
        %1512 = vmatpush1.msra.mxu0 0.0
        %1513 = vmatprep.subr.mxu0 0.0
        %1514 = vmatpush1.msra.mxu0 0.0
        %1515 = vmatprep.subr.mxu0 0.0
        %1516 = vmatpush1.msra.mxu0 0.0
        %1517 = vmatprep.subr.mxu0 0.0
        %1518 = vmatpush1.msra.mxu0 0.0
        %1519 = vmatprep.mubr.f32.mxu0 0.0
        %1520 = vmatmul.mubr.f32.gmra.mrb[0].mxu0 %v1404
        %v1521 = vpop.f32.mrb[0].mxu0
        %v1522 = vadd.f32 0.0, %v1521
        %v1523 = vpop.f32.mrb[0].mxu0
        %v1524 = vadd.f32 0.0, %v1523
        %1525 = vmatprep.mubr.f32.mxu0 0.0
        %1526 = vmatmul.mubr.f32.gmra.mrb[0].mxu0 %v1407
        %v1527 = vpop.f32.mrb[0].mxu0
        %v1528 = vadd.f32 0.0, %v1527
        %v1529 = vpop.f32.mrb[0].mxu0
        %v1530 = vadd.f32 0.0, %v1529
        %1531 = vmatprep.mubr.f32.mxu0 0.0
        %1532 = vmatmul.mubr.f32.gmra.mrb[0].mxu0 %v1410
        %v1533 = vpop.f32.mrb[0].mxu0
        %v1534 = vadd.f32 0.0, %v1533
        %v1535 = vpop.f32.mrb[0].mxu0
        %v1536 = vadd.f32 0.0, %v1535
        %1537 = vmatprep.mubr.f32.mxu0 0.0
        %1538 = vmatmul.mubr.f32.gmra.mrb[0].mxu0 %v1413
        %v1539 = vpop.f32.mrb[0].mxu0
        %v1540 = vadd.f32 0.0, %v1539
        %v1541 = vpop.f32.mrb[0].mxu0
        %v1542 = vadd.f32 0.0, %v1541
        %1543 = vmatprep.mubr.f32.mxu0 0.0
        %1544 = vmatmul.mubr.f32.gmra.mrb[0].mxu0 %v1416
        %v1545 = vpop.f32.mrb[0].mxu0
        %v1546 = vadd.f32 0.0, %v1545
        %v1547 = vpop.f32.mrb[0].mxu0
        %v1548 = vadd.f32 0.0, %v1547
        %1549 = vmatprep.mubr.f32.mxu0 0.0
        %1550 = vmatmul.mubr.f32.gmra.mrb[0].mxu0 %v1419
        %v1551 = vpop.f32.mrb[0].mxu0
        %v1552 = vadd.f32 0.0, %v1551
        %v1553 = vpop.f32.mrb[0].mxu0
        %v1554 = vadd.f32 0.0, %v1553
        %1555 = vmatprep.mubr.f32.mxu0 0.0
        %1556 = vmatmul.mubr.f32.gmra.mrb[0].mxu0 %v1422
        %v1557 = vpop.f32.mrb[0].mxu0
        %v1558 = vadd.f32 0.0, %v1557
        %v1559 = vpop.f32.mrb[0].mxu0
        %v1560 = vadd.f32 0.0, %v1559
        %1561 = vmatprep.mubr.f32.mxu0 0.0
        %1562 = vmatmul.mubr.f32.gmra.mrb[0].mxu0 %v1425
        %v1563 = vpop.f32.mrb[0].mxu0
        %v1564 = vadd.f32 0.0, %v1563
        %v1565 = vpop.f32.mrb[0].mxu0
        %v1566 = vadd.f32 0.0, %v1565
        %1567 = vmatprep.mubr.f32.mxu0 0.0
        %1568 = vmatmul.mubr.f32.gmra.mrb[0].mxu0 %v1428
        %v1569 = vpop.f32.mrb[0].mxu0
        %v1570 = vadd.f32 0.0, %v1569
        %v1571 = vpop.f32.mrb[0].mxu0
        %v1572 = vadd.f32 0.0, %v1571
        %1573 = vmatprep.mubr.f32.mxu0 0.0
        %1574 = vmatmul.mubr.f32.gmra.mrb[0].mxu0 %v1431
        %v1575 = vpop.f32.mrb[0].mxu0
        %v1576 = vadd.f32 0.0, %v1575
        %v1577 = vpop.f32.mrb[0].mxu0
        %v1578 = vadd.f32 0.0, %v1577
        %1579 = vmatprep.mubr.f32.mxu0 0.0
        %1580 = vmatmul.mubr.f32.gmra.mrb[0].mxu0 %v1434
        %v1581 = vpop.f32.mrb[0].mxu0
        %v1582 = vadd.f32 0.0, %v1581
        %v1583 = vpop.f32.mrb[0].mxu0
        %v1584 = vadd.f32 0.0, %v1583
        %1585 = vmatprep.mubr.f32.mxu0 0.0
        %1586 = vmatmul.mubr.f32.gmra.mrb[0].mxu0 %v1437
        %v1587 = vpop.f32.mrb[0].mxu0
        %v1588 = vadd.f32 0.0, %v1587
        %v1589 = vpop.f32.mrb[0].mxu0
        %v1590 = vadd.f32 0.0, %v1589
        %1591 = vmatprep.mubr.f32.mxu0 0.0
        %1592 = vmatmul.mubr.f32.gmra.mrb[0].mxu0 %v1440
        %v1593 = vpop.f32.mrb[0].mxu0
        %v1594 = vadd.f32 0.0, %v1593
        %v1595 = vpop.f32.mrb[0].mxu0
        %v1596 = vadd.f32 0.0, %v1595
        %1597 = vmatprep.mubr.f32.mxu0 0.0
        %1598 = vmatmul.mubr.f32.gmra.mrb[0].mxu0 %v1443
        %v1599 = vpop.f32.mrb[0].mxu0
        %v1600 = vadd.f32 0.0, %v1599
        %v1601 = vpop.f32.mrb[0].mxu0
        %v1602 = vadd.f32 0.0, %v1601
        %1603 = vmatprep.mubr.f32.mxu0 0.0
        %1604 = vmatmul.mubr.f32.gmra.mrb[0].mxu0 %v1446
        %v1605 = vpop.f32.mrb[0].mxu0
        %v1606 = vadd.f32 0.0, %v1605
        %v1607 = vpop.f32.mrb[0].mxu0
        %v1608 = vadd.f32 0.0, %v1607
        %1609 = vmatprep.mubr.f32.mxu0 0.0
        %1610 = vmatmul.mubr.f32.gmra.mrb[0].mxu0 %v1449
        %v1611 = vpop.f32.mrb[0].mxu0
        %v1612 = vadd.f32 0.0, %v1611
        %v1613 = vpop.f32.mrb[0].mxu0
        %v1614 = vadd.f32 0.0, %v1613
        %1615 = vdwg.mxu0
        %v1616 = vmul.f32 %v1522, %v861
        %v1617 = vmul.f32 %v1524, %v862
        %v1618 = vmul.f32 %v1528, %v863
        %v1619 = vmul.f32 %v1530, %v864
        %v1620 = vmul.f32 %v1534, %v865
        %v1621 = vmul.f32 %v1536, %v866
        %v1622 = vmul.f32 %v1540, %v867
        %v1623 = vmul.f32 %v1542, %v868
        %v1624 = vmul.f32 %v1546, %v869
        %v1625 = vmul.f32 %v1548, %v870
        %v1626 = vmul.f32 %v1552, %v871
        %v1627 = vmul.f32 %v1554, %v872
        %v1628 = vmul.f32 %v1558, %v873
        %v1629 = vmul.f32 %v1560, %v874
        %v1630 = vmul.f32 %v1564, %v875
        %v1631 = vmul.f32 %v1566, %v876
        %v1632 = vmul.f32 %v1570, %v877
        %v1633 = vmul.f32 %v1572, %v878
        %v1634 = vmul.f32 %v1576, %v879
        %v1635 = vmul.f32 %v1578, %v880
        %v1636 = vmul.f32 %v1582, %v881
        %v1637 = vmul.f32 %v1584, %v882
        %v1638 = vmul.f32 %v1588, %v883
        %v1639 = vmul.f32 %v1590, %v884
        %v1640 = vmul.f32 %v1594, %v885
        %v1641 = vmul.f32 %v1596, %v886
        %v1642 = vmul.f32 %v1600, %v887
        %v1643 = vmul.f32 %v1602, %v888
        %v1644 = vmul.f32 %v1606, %v889
        %v1645 = vmul.f32 %v1608, %v890
        %v1646 = vmul.f32 %v1612, %v891
        %v1647 = vmul.f32 %v1614, %v892
        %v1648 = vld [vmem:[%s457] sm:$0xff]
        %v1649 = vld [vmem:[%s457 + $0x8] sm:$0xff]
        %v1650 = vld [vmem:[%s457 + $0x10] sm:$0xff]
        %v1651 = vld [vmem:[%s457 + $0x18] sm:$0xff]
        %v1652 = vld [vmem:[%s457 + $0x20] sm:$0xff]
        %v1653 = vld [vmem:[%s457 + $0x28] sm:$0xff]
        %v1654 = vld [vmem:[%s457 + $0x30] sm:$0xff]
        %v1655 = vld [vmem:[%s457 + $0x38] sm:$0xff]
        %v1656 = vld [vmem:[%s457 + $0x40] sm:$0xff]
        %v1657 = vld [vmem:[%s457 + $0x48] sm:$0xff]
        %v1658 = vld [vmem:[%s457 + $0x50] sm:$0xff]
        %v1659 = vld [vmem:[%s457 + $0x58] sm:$0xff]
        %v1660 = vld [vmem:[%s457 + $0x60] sm:$0xff]
        %v1661 = vld [vmem:[%s457 + $0x68] sm:$0xff]
        %v1662 = vld [vmem:[%s457 + $0x70] sm:$0xff]
        %v1663 = vld [vmem:[%s457 + $0x78] sm:$0xff]
        %v1664 = vld [vmem:[%s457 + $0x80] sm:$0xff]
        %v1665 = vld [vmem:[%s457 + $0x88] sm:$0xff]
        %v1666 = vld [vmem:[%s457 + $0x90] sm:$0xff]
        %v1667 = vld [vmem:[%s457 + $0x98] sm:$0xff]
        %v1668 = vld [vmem:[%s457 + $0xa0] sm:$0xff]
        %v1669 = vld [vmem:[%s457 + $0xa8] sm:$0xff]
        %v1670 = vld [vmem:[%s457 + $0xb0] sm:$0xff]
        %v1671 = vld [vmem:[%s457 + $0xb8] sm:$0xff]
        %v1672 = vld [vmem:[%s457 + $0xc0] sm:$0xff]
        %v1673 = vld [vmem:[%s457 + $0xc8] sm:$0xff]
        %v1674 = vld [vmem:[%s457 + $0xd0] sm:$0xff]
        %v1675 = vld [vmem:[%s457 + $0xd8] sm:$0xff]
        %v1676 = vld [vmem:[%s457 + $0xe0] sm:$0xff]
        %v1677 = vld [vmem:[%s457 + $0xe8] sm:$0xff]
        %v1678 = vld [vmem:[%s457 + $0xf0] sm:$0xff]
        %v1679 = vld [vmem:[%s457 + $0xf8] sm:$0xff]
        %v1680 = vld [vmem:[%s457 + $0x100] sm:$0xff]
        %v1681 = vld [vmem:[%s457 + $0x108] sm:$0xff]
        %v1682 = vld [vmem:[%s457 + $0x110] sm:$0xff]
        %v1683 = vld [vmem:[%s457 + $0x118] sm:$0xff]
        %v1684 = vld [vmem:[%s457 + $0x120] sm:$0xff]
        %v1685 = vld [vmem:[%s457 + $0x128] sm:$0xff]
        %v1686 = vld [vmem:[%s457 + $0x130] sm:$0xff]
        %v1687 = vld [vmem:[%s457 + $0x138] sm:$0xff]
        %v1688 = vld [vmem:[%s457 + $0x140] sm:$0xff]
        %v1689 = vld [vmem:[%s457 + $0x148] sm:$0xff]
        %v1690 = vld [vmem:[%s457 + $0x150] sm:$0xff]
        %v1691 = vld [vmem:[%s457 + $0x158] sm:$0xff]
        %v1692 = vld [vmem:[%s457 + $0x160] sm:$0xff]
        %v1693 = vld [vmem:[%s457 + $0x168] sm:$0xff]
        %v1694 = vld [vmem:[%s457 + $0x170] sm:$0xff]
        %v1695 = vld [vmem:[%s457 + $0x178] sm:$0xff]
        %v1696 = vld [vmem:[%s457 + $0x180] sm:$0xff]
        %v1697 = vld [vmem:[%s457 + $0x188] sm:$0xff]
        %v1698 = vld [vmem:[%s457 + $0x190] sm:$0xff]
        %v1699 = vld [vmem:[%s457 + $0x198] sm:$0xff]
        %v1700 = vld [vmem:[%s457 + $0x1a0] sm:$0xff]
        %v1701 = vld [vmem:[%s457 + $0x1a8] sm:$0xff]
        %v1702 = vld [vmem:[%s457 + $0x1b0] sm:$0xff]
        %v1703 = vld [vmem:[%s457 + $0x1b8] sm:$0xff]
        %v1704 = vld [vmem:[%s457 + $0x1c0] sm:$0xff]
        %v1705 = vld [vmem:[%s457 + $0x1c8] sm:$0xff]
        %v1706 = vld [vmem:[%s457 + $0x1d0] sm:$0xff]
        %v1707 = vld [vmem:[%s457 + $0x1d8] sm:$0xff]
        %v1708 = vld [vmem:[%s457 + $0x1e0] sm:$0xff]
        %v1709 = vld [vmem:[%s457 + $0x1e8] sm:$0xff]
        %v1710 = vld [vmem:[%s457 + $0x1f0] sm:$0xff]
        %v1711 = vld [vmem:[%s457 + $0x1f8] sm:$0xff]
        %1712 = vmatprep.subr.mxu0 %v1649
        %1713 = vmatpush1.msra.mxu0 %v1648
        %1714 = vmatprep.subr.mxu0 %v1651
        %1715 = vmatpush1.msra.mxu0 %v1650
        %1716 = vmatprep.subr.mxu0 %v1653
        %1717 = vmatpush1.msra.mxu0 %v1652
        %1718 = vmatprep.subr.mxu0 %v1655
        %1719 = vmatpush1.msra.mxu0 %v1654
        %1720 = vmatprep.subr.mxu0 %v1657
        %1721 = vmatpush1.msra.mxu0 %v1656
        %1722 = vmatprep.subr.mxu0 %v1659
        %1723 = vmatpush1.msra.mxu0 %v1658
        %1724 = vmatprep.subr.mxu0 %v1661
        %1725 = vmatpush1.msra.mxu0 %v1660
        %1726 = vmatprep.subr.mxu0 %v1663
        %1727 = vmatpush1.msra.mxu0 %v1662
        %1728 = vmatprep.subr.mxu0 %v1665
        %1729 = vmatpush1.msra.mxu0 %v1664
        %1730 = vmatprep.subr.mxu0 %v1667
        %1731 = vmatpush1.msra.mxu0 %v1666
        %1732 = vmatprep.subr.mxu0 %v1669
        %1733 = vmatpush1.msra.mxu0 %v1668
        %1734 = vmatprep.subr.mxu0 %v1671
        %1735 = vmatpush1.msra.mxu0 %v1670
        %1736 = vmatprep.subr.mxu0 %v1673
        %1737 = vmatpush1.msra.mxu0 %v1672
        %1738 = vmatprep.subr.mxu0 %v1675
        %1739 = vmatpush1.msra.mxu0 %v1674
        %1740 = vmatprep.subr.mxu0 %v1677
        %1741 = vmatpush1.msra.mxu0 %v1676
        %1742 = vmatprep.subr.mxu0 %v1679
        %1743 = vmatpush1.msra.mxu0 %v1678
        %1744 = vmatprep.subr.mxu0 %v1681
        %1745 = vmatpush1.msra.mxu0 %v1680
        %1746 = vmatprep.subr.mxu0 %v1683
        %1747 = vmatpush1.msra.mxu0 %v1682
        %1748 = vmatprep.subr.mxu0 %v1685
        %1749 = vmatpush1.msra.mxu0 %v1684
        %1750 = vmatprep.subr.mxu0 %v1687
        %1751 = vmatpush1.msra.mxu0 %v1686
        %1752 = vmatprep.subr.mxu0 %v1689
        %1753 = vmatpush1.msra.mxu0 %v1688
        %1754 = vmatprep.subr.mxu0 %v1691
        %1755 = vmatpush1.msra.mxu0 %v1690
        %1756 = vmatprep.subr.mxu0 %v1693
        %1757 = vmatpush1.msra.mxu0 %v1692
        %1758 = vmatprep.subr.mxu0 %v1695
        %1759 = vmatpush1.msra.mxu0 %v1694
        %1760 = vmatprep.subr.mxu0 %v1697
        %1761 = vmatpush1.msra.mxu0 %v1696
        %1762 = vmatprep.subr.mxu0 %v1699
        %1763 = vmatpush1.msra.mxu0 %v1698
        %1764 = vmatprep.subr.mxu0 %v1701
        %1765 = vmatpush1.msra.mxu0 %v1700
        %1766 = vmatprep.subr.mxu0 %v1703
        %1767 = vmatpush1.msra.mxu0 %v1702
        %1768 = vmatprep.subr.mxu0 %v1705
        %1769 = vmatpush1.msra.mxu0 %v1704
        %1770 = vmatprep.subr.mxu0 %v1707
        %1771 = vmatpush1.msra.mxu0 %v1706
        %1772 = vmatprep.subr.mxu0 %v1709
        %1773 = vmatpush1.msra.mxu0 %v1708
        %1774 = vmatprep.subr.mxu0 %v1711
        %1775 = vmatpush1.msra.mxu0 %v1710
        %1776 = vmatprep.mubr.f32.mxu0 %v1617
        %1777 = vmatmul.mubr.f32.gmra.mrb[0].mxu0 %v1616
        %v1778 = vpop.f32.mrb[0].mxu0
        %v1779 = vadd.f32 0.0, %v1778
        %v1780 = vpop.f32.mrb[0].mxu0
        %v1781 = vadd.f32 0.0, %v1780
        %1782 = vmatprep.mubr.f32.mxu0 %v1619
        %1783 = vmatmul.mubr.f32.gmra.mrb[0].mxu0 %v1618
        %v1784 = vpop.f32.mrb[0].mxu0
        %v1785 = vadd.f32 0.0, %v1784
        %v1786 = vpop.f32.mrb[0].mxu0
        %v1787 = vadd.f32 0.0, %v1786
        %1788 = vmatprep.mubr.f32.mxu0 %v1621
        %1789 = vmatmul.mubr.f32.gmra.mrb[0].mxu0 %v1620
        %v1790 = vpop.f32.mrb[0].mxu0
        %v1791 = vadd.f32 0.0, %v1790
        %v1792 = vpop.f32.mrb[0].mxu0
        %v1793 = vadd.f32 0.0, %v1792
        %1794 = vmatprep.mubr.f32.mxu0 %v1623
        %1795 = vmatmul.mubr.f32.gmra.mrb[0].mxu0 %v1622
        %v1796 = vpop.f32.mrb[0].mxu0
        %v1797 = vadd.f32 0.0, %v1796
        %v1798 = vpop.f32.mrb[0].mxu0
        %v1799 = vadd.f32 0.0, %v1798
        %1800 = vmatprep.mubr.f32.mxu0 %v1625
        %1801 = vmatmul.mubr.f32.gmra.mrb[0].mxu0 %v1624
        %v1802 = vpop.f32.mrb[0].mxu0
        %v1803 = vadd.f32 0.0, %v1802
        %v1804 = vpop.f32.mrb[0].mxu0
        %v1805 = vadd.f32 0.0, %v1804
        %1806 = vmatprep.mubr.f32.mxu0 %v1627
        %1807 = vmatmul.mubr.f32.gmra.mrb[0].mxu0 %v1626
        %v1808 = vpop.f32.mrb[0].mxu0
        %v1809 = vadd.f32 0.0, %v1808
        %v1810 = vpop.f32.mrb[0].mxu0
        %v1811 = vadd.f32 0.0, %v1810
        %1812 = vmatprep.mubr.f32.mxu0 %v1629
        %1813 = vmatmul.mubr.f32.gmra.mrb[0].mxu0 %v1628
        %v1814 = vpop.f32.mrb[0].mxu0
        %v1815 = vadd.f32 0.0, %v1814
        %v1816 = vpop.f32.mrb[0].mxu0
        %v1817 = vadd.f32 0.0, %v1816
        %1818 = vmatprep.mubr.f32.mxu0 %v1631
        %1819 = vmatmul.mubr.f32.gmra.mrb[0].mxu0 %v1630
        %v1820 = vpop.f32.mrb[0].mxu0
        %v1821 = vadd.f32 0.0, %v1820
        %v1822 = vpop.f32.mrb[0].mxu0
        %v1823 = vadd.f32 0.0, %v1822
        %1824 = vmatprep.mubr.f32.mxu0 %v1633
        %1825 = vmatmul.mubr.f32.gmra.mrb[0].mxu0 %v1632
        %v1826 = vpop.f32.mrb[0].mxu0
        %v1827 = vadd.f32 0.0, %v1826
        %v1828 = vpop.f32.mrb[0].mxu0
        %v1829 = vadd.f32 0.0, %v1828
        %1830 = vmatprep.mubr.f32.mxu0 %v1635
        %1831 = vmatmul.mubr.f32.gmra.mrb[0].mxu0 %v1634
        %v1832 = vpop.f32.mrb[0].mxu0
        %v1833 = vadd.f32 0.0, %v1832
        %v1834 = vpop.f32.mrb[0].mxu0
        %v1835 = vadd.f32 0.0, %v1834
        %1836 = vmatprep.mubr.f32.mxu0 %v1637
        %1837 = vmatmul.mubr.f32.gmra.mrb[0].mxu0 %v1636
        %v1838 = vpop.f32.mrb[0].mxu0
        %v1839 = vadd.f32 0.0, %v1838
        %v1840 = vpop.f32.mrb[0].mxu0
        %v1841 = vadd.f32 0.0, %v1840
        %1842 = vmatprep.mubr.f32.mxu0 %v1639
        %1843 = vmatmul.mubr.f32.gmra.mrb[0].mxu0 %v1638
        %v1844 = vpop.f32.mrb[0].mxu0
        %v1845 = vadd.f32 0.0, %v1844
        %v1846 = vpop.f32.mrb[0].mxu0
        %v1847 = vadd.f32 0.0, %v1846
        %1848 = vmatprep.mubr.f32.mxu0 %v1641
        %1849 = vmatmul.mubr.f32.gmra.mrb[0].mxu0 %v1640
        %v1850 = vpop.f32.mrb[0].mxu0
        %v1851 = vadd.f32 0.0, %v1850
        %v1852 = vpop.f32.mrb[0].mxu0
        %v1853 = vadd.f32 0.0, %v1852
        %1854 = vmatprep.mubr.f32.mxu0 %v1643
        %1855 = vmatmul.mubr.f32.gmra.mrb[0].mxu0 %v1642
        %v1856 = vpop.f32.mrb[0].mxu0
        %v1857 = vadd.f32 0.0, %v1856
        %v1858 = vpop.f32.mrb[0].mxu0
        %v1859 = vadd.f32 0.0, %v1858
        %1860 = vmatprep.mubr.f32.mxu0 %v1645
        %1861 = vmatmul.mubr.f32.gmra.mrb[0].mxu0 %v1644
        %v1862 = vpop.f32.mrb[0].mxu0
        %v1863 = vadd.f32 0.0, %v1862
        %v1864 = vpop.f32.mrb[0].mxu0
        %v1865 = vadd.f32 0.0, %v1864
        %1866 = vmatprep.mubr.f32.mxu0 %v1647
        %1867 = vmatmul.mubr.f32.gmra.mrb[0].mxu0 %v1646
        %v1868 = vpop.f32.mrb[0].mxu0
        %v1869 = vadd.f32 0.0, %v1868
        %v1870 = vpop.f32.mrb[0].mxu0
        %v1871 = vadd.f32 0.0, %v1870
        %1872 = vdwg.mxu0
        %v1873 = vld [vmem:[%s9] sm:$0xf]
        %v1874 = vld [vmem:[%s10] sm:$0xf]
        %1876 = vset.pattern.permute.xlu0 0
        %1877 = vperm.xlu0 %1876, %v1874
        %v1878 = vpop.permute.xlu0 %1877
        %1880 = vmatprep.subr.mxu0 %v1781
        %1881 = vmatpush1.msra.mxu0 %v1779
        %1882 = vmatprep.subr.mxu0 %v1787
        %1883 = vmatpush1.msra.mxu0 %v1785
        %1884 = vmatprep.subr.mxu0 %v1793
        %1885 = vmatpush1.msra.mxu0 %v1791
        %1886 = vmatprep.subr.mxu0 %v1799
        %1887 = vmatpush1.msra.mxu0 %v1797
        %1888 = vmatprep.subr.mxu0 %v1805
        %1889 = vmatpush1.msra.mxu0 %v1803
        %1890 = vmatprep.subr.mxu0 %v1811
        %1891 = vmatpush1.msra.mxu0 %v1809
        %1892 = vmatprep.subr.mxu0 %v1817
        %1893 = vmatpush1.msra.mxu0 %v1815
        %1894 = vmatprep.subr.mxu0 %v1823
        %1895 = vmatpush1.msra.mxu0 %v1821
        %1896 = vmatprep.subr.mxu0 %v1829
        %1897 = vmatpush1.msra.mxu0 %v1827
        %1898 = vmatprep.subr.mxu0 %v1835
        %1899 = vmatpush1.msra.mxu0 %v1833
        %1900 = vmatprep.subr.mxu0 %v1841
        %1901 = vmatpush1.msra.mxu0 %v1839
        %1902 = vmatprep.subr.mxu0 %v1847
        %1903 = vmatpush1.msra.mxu0 %v1845
        %1904 = vmatprep.subr.mxu0 %v1853
        %1905 = vmatpush1.msra.mxu0 %v1851
        %1906 = vmatprep.subr.mxu0 %v1859
        %1907 = vmatpush1.msra.mxu0 %v1857
        %1908 = vmatprep.subr.mxu0 %v1865
        %1909 = vmatpush1.msra.mxu0 %v1863
        %1910 = vmatprep.subr.mxu0 %v1871
        %1911 = vmatpush1.msra.mxu0 %v1869
        %1912 = vmatprep.subr.mxu0 0.0
        %1913 = vmatpush1.msra.mxu0 0.0
        %1914 = vmatprep.subr.mxu0 0.0
        %1915 = vmatpush1.msra.mxu0 0.0
        %1916 = vmatprep.subr.mxu0 0.0
        %1917 = vmatpush1.msra.mxu0 0.0
        %1918 = vmatprep.subr.mxu0 0.0
        %1919 = vmatpush1.msra.mxu0 0.0
        %1920 = vmatprep.subr.mxu0 0.0
        %1921 = vmatpush1.msra.mxu0 0.0
        %1922 = vmatprep.subr.mxu0 0.0
        %1923 = vmatpush1.msra.mxu0 0.0
        %1924 = vmatprep.subr.mxu0 0.0
        %1925 = vmatpush1.msra.mxu0 0.0
        %1926 = vmatprep.subr.mxu0 0.0
        %1927 = vmatpush1.msra.mxu0 0.0
        %1928 = vmatprep.subr.mxu0 0.0
        %1929 = vmatpush1.msra.mxu0 0.0
        %1930 = vmatprep.subr.mxu0 0.0
        %1931 = vmatpush1.msra.mxu0 0.0
        %1932 = vmatprep.subr.mxu0 0.0
        %1933 = vmatpush1.msra.mxu0 0.0
        %1934 = vmatprep.subr.mxu0 0.0
        %1935 = vmatpush1.msra.mxu0 0.0
        %1936 = vmatprep.subr.mxu0 0.0
        %1937 = vmatpush1.msra.mxu0 0.0
        %1938 = vmatprep.subr.mxu0 0.0
        %1939 = vmatpush1.msra.mxu0 0.0
        %1940 = vmatprep.subr.mxu0 0.0
        %1941 = vmatpush1.msra.mxu0 0.0
        %1942 = vmatprep.subr.mxu0 0.0
        %1943 = vmatpush1.msra.mxu0 0.0
        %1944 = vmatprep.mubr.f32.mxu0 0.0
        %1945 = vmatmul.mubr.f32.gmra.mrb[0].mxu0 %v1873
        %v1946 = vpop.f32.mrb[0].mxu0
        %v1947 = vadd.f32 %v1878, %v1946
        %v1948 = vpop.f32.mrb[0].mxu0
        %v1949 = vadd.f32 %v1878, %v1948
        %1950 = vdwg.mxu0
        %v1951 = vld [vmem:[%s11] sm:$0xf]
        %v1952 = vld [vmem:[%s527] sm:$0xff]
        %v1953 = vld [vmem:[%s527 + $0x8] sm:$0xff]
        %v1954 = vld [vmem:[%s12] sm:$0xf]
        %1956 = vset.pattern.permute.xlu0 0
        %1957 = vperm.xlu0 %1956, %v1954
        %v1958 = vpop.permute.xlu0 %1957
        %vm1960 = vcmask 64512
        %v1962 = vsel %vm1960, %v1951, 0
        %1964 = vmatprep.subr.mxu0 %v1953
        %1965 = vmatpush1.msra.mxu0 %v1952
        %1966 = vmatprep.subr.mxu0 0.0
        %1967 = vmatpush1.msra.mxu0 0.0
        %1968 = vmatprep.subr.mxu0 0.0
        %1969 = vmatpush1.msra.mxu0 0.0
        %1970 = vmatprep.subr.mxu0 0.0
        %1971 = vmatpush1.msra.mxu0 0.0
        %1972 = vmatprep.subr.mxu0 0.0
        %1973 = vmatpush1.msra.mxu0 0.0
        %1974 = vmatprep.subr.mxu0 0.0
        %1975 = vmatpush1.msra.mxu0 0.0
        %1976 = vmatprep.subr.mxu0 0.0
        %1977 = vmatpush1.msra.mxu0 0.0
        %1978 = vmatprep.subr.mxu0 0.0
        %1979 = vmatpush1.msra.mxu0 0.0
        %1980 = vmatprep.subr.mxu0 0.0
        %1981 = vmatpush1.msra.mxu0 0.0
        %1982 = vmatprep.subr.mxu0 0.0
        %1983 = vmatpush1.msra.mxu0 0.0
        %1984 = vmatprep.subr.mxu0 0.0
        %1985 = vmatpush1.msra.mxu0 0.0
        %1986 = vmatprep.subr.mxu0 0.0
        %1987 = vmatpush1.msra.mxu0 0.0
        %1988 = vmatprep.subr.mxu0 0.0
        %1989 = vmatpush1.msra.mxu0 0.0
        %1990 = vmatprep.subr.mxu0 0.0
        %1991 = vmatpush1.msra.mxu0 0.0
        %1992 = vmatprep.subr.mxu0 0.0
        %1993 = vmatpush1.msra.mxu0 0.0
        %1994 = vmatprep.subr.mxu0 0.0
        %1995 = vmatpush1.msra.mxu0 0.0
        %1996 = vmatprep.subr.mxu0 0.0
        %1997 = vmatpush1.msra.mxu0 0.0
        %1998 = vmatprep.subr.mxu0 0.0
        %1999 = vmatpush1.msra.mxu0 0.0
        %2000 = vmatprep.subr.mxu0 0.0
        %2001 = vmatpush1.msra.mxu0 0.0
        %2002 = vmatprep.subr.mxu0 0.0
        %2003 = vmatpush1.msra.mxu0 0.0
        %2004 = vmatprep.subr.mxu0 0.0
        %2005 = vmatpush1.msra.mxu0 0.0
        %2006 = vmatprep.subr.mxu0 0.0
        %2007 = vmatpush1.msra.mxu0 0.0
        %2008 = vmatprep.subr.mxu0 0.0
        %2009 = vmatpush1.msra.mxu0 0.0
        %2010 = vmatprep.subr.mxu0 0.0
        %2011 = vmatpush1.msra.mxu0 0.0
        %2012 = vmatprep.subr.mxu0 0.0
        %2013 = vmatpush1.msra.mxu0 0.0
        %2014 = vmatprep.subr.mxu0 0.0
        %2015 = vmatpush1.msra.mxu0 0.0
        %2016 = vmatprep.subr.mxu0 0.0
        %2017 = vmatpush1.msra.mxu0 0.0
        %2018 = vmatprep.subr.mxu0 0.0
        %2019 = vmatpush1.msra.mxu0 0.0
        %2020 = vmatprep.subr.mxu0 0.0
        %2021 = vmatpush1.msra.mxu0 0.0
        %2022 = vmatprep.subr.mxu0 0.0
        %2023 = vmatpush1.msra.mxu0 0.0
        %2024 = vmatprep.subr.mxu0 0.0
        %2025 = vmatpush1.msra.mxu0 0.0
        %2026 = vmatprep.subr.mxu0 0.0
        %2027 = vmatpush1.msra.mxu0 0.0
        %2028 = vmatprep.mubr.f32.mxu0 0.0
        %2029 = vmatmul.mubr.f32.gmra.mrb[0].mxu0 %v1962
        %v2030 = vpop.f32.mrb[0].mxu0
        %v2031 = vadd.f32 %v1958, %v2030
        %v2032 = vpop.f32.mrb[0].mxu0
        %v2033 = vadd.f32 %v1958, %v2032
        %2034 = vdwg.mxu0
        %2035 = vst [vmem:[%s513] sm:$0xf] %v1947
        %2036 = vst [vmem:[%s513 + $0x8] sm:$0xf] %v1949
        %v2039 = vrot.slane %v2031, 4
        %v2040 = vrot.slane %v2033, 4
        %2043 = vst [vmem:[%s513] sm:$0xf0] %v2039
        %2044 = vst [vmem:[%s513 + $0x8] sm:$0xf0] %v2040
        %s2045 = sand.u32 %s342, 1
        %s2046 = scalar_lea.sflag [#allocation4], %s2045
        %s2047 = sand.u32 %s342, 1
        %s2048 = smul.addr %s2047, 16
        %s2049 = scalar_lea.vmem [#allocation5], %s2048
        // Predicated region
        $region77: #{tpu_custom_call.1} parent=71 // pred_check
          %p2050 = pneg %p352
        $region78: #{tpu_custom_call.1} parent=71 // pred_check_branch
          %2052 = sbr.rel (%p2050) target = $region80
        $region79: #{tpu_custom_call.1} parent=71 // pred_region
          %s2053 = smul.u32 2, %s35
          %s2055 = ssub.s32 256, 256
          %2056 = vsyncadd %s2046, %s2055
          %s2057 = smul.addr %s34, 8
          %s2058 = sadd.s32 %s2053, %s2057
          %s2059 = smul.addr %s2058, 128
          %s2060 = scalar_lea.hbm %s13, %s2059
          %s2062 = sshll.u32 %s2049, 4
          %s2063 = int_to_ptr.vmem [resolvable:$true] %s2062
          %2065 = dma.vmem_to_hbm [thread:$0]  %s2063, 256, %s2060, %s2046
        $region80: #{tpu_custom_call.1} parent=71 // pred_fallthru
          _
      $region72: #{tpu_custom_call.1} parent=5 // pred_fallthru
        _
      %p2066 = scmp.le.s32.totalorder 2, %s25
      // Predicated region
      $region81: #{tpu_custom_call.1} parent=5 // pred_check
        %p2067 = pneg %p2066
      $region82: #{tpu_custom_call.1} parent=5 // pred_check_branch
        %2069 = sbr.rel (%p2067) target = $region84
      $region83: #{tpu_custom_call.1} parent=5 // pred_region
        %s2070 = ssub.s32 %s25, 2
        // Predicated region
        $region85: #{tpu_custom_call.1} parent=83 // pred_check
          %p2071 = pneg %p358
        $region86: #{tpu_custom_call.1} parent=83 // pred_check_branch
          %2073 = sbr.rel (%p2071) target = $region88
        $region87: #{tpu_custom_call.1} parent=83 // pred_region
          %s2074 = sand.u32 %s343, 1
          %s2075 = scalar_lea.sflag [#allocation4], %s2074
          %s2076 = sand.u32 %s343, 1
          %s2077 = smul.addr %s2076, 16
          %s2078 = scalar_lea.vmem [#allocation5], %s2077
          %2079 = dma.done %s2075, 256
        $region88: #{tpu_custom_call.1} parent=83 // pred_fallthru
          _
      $region84: #{tpu_custom_call.1} parent=5 // pred_fallthru
        _
    $region6: #{tpu_custom_call.1} parent=1 // loop_footer
      %s29 = sadd.s32 1, %s25
    $region7: #{tpu_custom_call.1} parent=1 // loop_footer_branch
      %24 = sbr.rel target = $region3
    $region8: #{tpu_custom_call.1} parent=1 // loop_exit
      _
    %2080 = vsyncpa [#allocation3], 1
    %s2081 = scalar_lea.sflag [#allocation3], 1
    %2082 = vsyncpa %s2081, 1
    %2083 = vsyncpa [#allocation4], 1
    %s2084 = scalar_lea.sflag [#allocation4], 1
    %2085 = vsyncpa %s2084, 1

</llo_original>
